<compile_context>
chip_gen: v7x
topology: tpu7x:2x2x1
jax: 0.10.0
libtpu: 0.0.40
codegen_flags: <defaults>
</compile_context>

<pallas_src>
import math
import functools

import jax
import jax.numpy as jnp
from jax import lax
from jax.experimental import pallas as pl
from jax.experimental.pallas import tpu as pltpu


# ---------------------------------------------------------------------------
# Fused Pallas kernel: one batch element per grid step.
# ---------------------------------------------------------------------------
def _mha_fused_kernel(x_ref, wq_ref, bq_ref, wo_ref, bo_ref, o_ref, *,
                      num_heads, scale):
    """Fused Q-projection -> per-head softmax attention -> output projection.

    x_ref : (1, S, D)  activations for one batch element
    wq_ref: (D, D)     Q weight, nn.Linear (out, in) layout (trans_b contraction)
    bq_ref: (1, D)
    wo_ref: (D, D)     output weight, (out, in) layout
    bo_ref: (1, D)
    o_ref : (1, S, D)  lane-dense, head-merged output
    """
    x = x_ref[0]                                   # (S, D)
    S, D = x.shape
    dk = D // num_heads
    nt = (((1,), (1,)), ((), ()))                  # contract dim1 with dim1 == A @ B.T

    # Q projection: q = x @ Wq^T + bq  (weights resident in VMEM, no XLA transpose).
    q = lax.dot_general(x, wq_ref[...], nt,
                        preferred_element_type=jnp.float32) + bq_ref[...]

    acc = jnp.zeros((S, D), jnp.float32)
    for h in range(num_heads):                     # static unroll: no grid-step overhead
        qh = q[:, h * dk:(h + 1) * dk]             # (S, dk)
        # Reference quirk: K = V = Q.  Scale only one operand (S*dk elems).
        sc = lax.dot_general(qh * scale, qh, nt,
                             preferred_element_type=jnp.float32)      # (S, S)
        m = jnp.max(sc, axis=-1, keepdims=True)
        e = jnp.exp(sc - m)
        p = e * pl.reciprocal(jnp.sum(e, axis=-1, keepdims=True), approx=True)
        ctx_h = jnp.dot(p, qh, preferred_element_type=jnp.float32)    # (S, dk)
        # Head merge fused into the output projection:
        #   out += ctx_h @ Wo[:, h*dk:(h+1)*dk]^T   -> (S, D), lane dense.
        acc = acc + lax.dot_general(ctx_h, wo_ref[:, h * dk:(h + 1) * dk], nt,
                                    preferred_element_type=jnp.float32)
    o_ref[0] = (acc + bo_ref[...]).astype(o_ref.dtype)


# ---------------------------------------------------------------------------
# Wrapper: single pallas_call for the whole forward.
# ---------------------------------------------------------------------------
def multi_head_attention_forward(x_query, params, num_heads):
    """Pallas implementation of MultiHeadAttention.forward(query, key, value).

    Because the reference `attention()` replaces key/value with query, only the
    query projection matters; key/value inputs & projections do not affect the
    output and are not taken as arguments.
    """
    B, S, D = x_query.shape
    assert D % num_heads == 0
    scale = 1.0 / math.sqrt(D // num_heads)
    kernel = functools.partial(_mha_fused_kernel, num_heads=num_heads, scale=scale)

    return pl.pallas_call(
        kernel,
        out_shape=jax.ShapeDtypeStruct((B, S, D), jnp.float32),
        grid=(B,),
        in_specs=[
            pl.BlockSpec((1, S, D), lambda b: (b, 0, 0)),   # x (per-batch tile)
            pl.BlockSpec((D, D), lambda b: (0, 0)),         # wq (resident, 4 KiB)
            pl.BlockSpec((1, D), lambda b: (0, 0)),         # bq
            pl.BlockSpec((D, D), lambda b: (0, 0)),         # wo (resident, 4 KiB)
            pl.BlockSpec((1, D), lambda b: (0, 0)),         # bo
        ],
        out_specs=pl.BlockSpec((1, S, D), lambda b: (b, 0, 0)),
        compiler_params=pltpu.CompilerParams(
            dimension_semantics=("parallel",),   # v7x: 2 TCs each take half the batch
        ),
    )(x_query, params["wq"], params["bq"].reshape(1, D),
      params["wo"], params["bo"].reshape(1, D))


# ---------------------------------------------------------------------------
# Pure-JAX reference (mirrors the PyTorch code, incl. the K=V=Q quirk)
# ---------------------------------------------------------------------------
def reference_forward(x_query, params, h):
    B, S, D = x_query.shape
    d_k = D // h
    q = x_query @ params["wq"].T + params["bq"]
    q = q.reshape(B, S, h, d_k).transpose(0, 2, 1, 3)
    scores = jnp.einsum("bhqd,bhkd->bhqk", q, q) / math.sqrt(d_k)
    p = jax.nn.softmax(scores, axis=-1)
    ctx = jnp.einsum("bhqk,bhkd->bhqd", p, q)
    ctx = ctx.transpose(0, 2, 1, 3).reshape(B, S, D)
    return ctx @ params["wo"].T + params["bo"]


# ---------------------------------------------------------------------------
if __name__ == "__main__":
    B, S, D, H = 2, 8, 32, 4   # batch, seq, d_model, heads  (d_k = 8)

    key = jax.random.PRNGKey(0)
    k_x, k_wq, k_bq, k_wo, k_bo = jax.random.split(key, 5)

    x = jax.random.normal(k_x, (B, S, D), dtype=jnp.float32)

    bound = 1.0 / math.sqrt(D)  # nn.Linear default init range
    params = {
        "wq": jax.random.uniform(k_wq, (D, D), jnp.float32, -bound, bound),
        "bq": jax.random.uniform(k_bq, (D,), jnp.float32, -bound, bound),
        "wo": jax.random.uniform(k_wo, (D, D), jnp.float32, -bound, bound),
        "bo": jax.random.uniform(k_bo, (D,), jnp.float32, -bound, bound),
    }

    out = multi_head_attention_forward(x, params, H)
    out = jax.block_until_ready(out)

    ref = reference_forward(x, params, H)
    assert out.shape == (B, S, D)
    # Tolerance loosened slightly vs exact f32 because the softmax denominator
    # uses the EUP approximate reciprocal (per perf review).
    assert jnp.allclose(out, ref, atol=2e-3, rtol=2e-3), "mismatch vs reference"

    print("KERNEL_OK")
</pallas_src>

<mosaic_0001>
module attributes {stable_mosaic.version = 11 : i64} {
  func.func @_mha_fused_kernel(%arg0: i32, %arg1: memref<1x8x32xf32, #tpu.memory_space<vmem>>, %arg2: memref<32x32xf32, #tpu.memory_space<vmem>>, %arg3: memref<1x32xf32, #tpu.memory_space<vmem>>, %arg4: memref<32x32xf32, #tpu.memory_space<vmem>>, %arg5: memref<1x32xf32, #tpu.memory_space<vmem>>, %arg6: memref<1x8x32xf32, #tpu.memory_space<vmem>>) attributes {dimension_semantics = [#tpu.dimension_semantics<parallel>], iteration_bounds = array<i64: 2>, scalar_prefetch = 0 : i64, scratch_operands = 0 : i64, tpu.core_type = #tpu.core_type<tc>, window_params = [{transform_indices = @transform_0, window_bounds = array<i64: 1, 8, 32>}, {pipeline_mode = #tpu.pipeline_mode<synchronous>, transform_indices = @transform_1, window_bounds = array<i64: 32, 32>}, {pipeline_mode = #tpu.pipeline_mode<synchronous>, transform_indices = @transform_2, window_bounds = array<i64: 1, 32>}, {pipeline_mode = #tpu.pipeline_mode<synchronous>, transform_indices = @transform_3, window_bounds = array<i64: 32, 32>}, {pipeline_mode = #tpu.pipeline_mode<synchronous>, transform_indices = @transform_4, window_bounds = array<i64: 1, 32>}, {transform_indices = @transform_5, window_bounds = array<i64: 1, 8, 32>}]} {
    %c0 = arith.constant 0 : index
    %c0_0 = arith.constant 0 : index
    %c0_1 = arith.constant 0 : index
    %0 = vector.load %arg1[%c0, %c0_0, %c0_1] : memref<1x8x32xf32, #tpu.memory_space<vmem>>, vector<1x8x32xf32>
    %1 = vector.shape_cast %0 : vector<1x8x32xf32> to vector<8x32xf32>
    %c0_2 = arith.constant 0 : index
    %c0_3 = arith.constant 0 : index
    %2 = vector.load %arg2[%c0_2, %c0_3] : memref<32x32xf32, #tpu.memory_space<vmem>>, vector<32x32xf32>
    %cst = arith.constant dense<0.000000e+00> : vector<8x32xf32>
    %3 = tpu.matmul %1, %2, %cst {dimension_numbers = #tpu.dot_dimension_numbers<[1], [1], [0], [0], [0, 0, 1, 0], [], []>} : vector<8x32xf32>, vector<32x32xf32>, vector<8x32xf32> -> vector<8x32xf32>
    %c0_4 = arith.constant 0 : index
    %c0_5 = arith.constant 0 : index
    %4 = vector.load %arg3[%c0_4, %c0_5] : memref<1x32xf32, #tpu.memory_space<vmem>>, vector<1x32xf32>
    %5 = vector.broadcast %4 : vector<1x32xf32> to vector<8x32xf32>
    %6 = arith.addf %3, %5 : vector<8x32xf32>
    %cst_6 = arith.constant 0.000000e+00 : f32
    %7 = vector.broadcast %cst_6 : f32 to vector<8x32xf32>
    %8 = vector.extract_strided_slice %6 {offsets = [0, 0], sizes = [8, 8], strides = [1, 1]} : vector<8x32xf32> to vector<8x8xf32>
    %cst_7 = arith.constant 0.353553385 : f32
    %9 = vector.broadcast %cst_7 : f32 to vector<8x8xf32>
    %10 = arith.mulf %8, %9 : vector<8x8xf32>
    %cst_8 = arith.constant dense<0.000000e+00> : vector<8x8xf32>
    %11 = tpu.matmul %10, %8, %cst_8 {dimension_numbers = #tpu.dot_dimension_numbers<[1], [1], [0], [0], [0, 0, 1, 0], [], []>} : vector<8x8xf32>, vector<8x8xf32>, vector<8x8xf32> -> vector<8x8xf32>
    %cst_9 = arith.constant dense<0xFF800000> : vector<8xf32>
    %12 = vector.multi_reduction <maximumf>, %11, %cst_9 [1] : vector<8x8xf32> to vector<8xf32>
    %13 = vector.shape_cast %12 : vector<8xf32> to vector<8x1xf32>
    %14 = vector.broadcast %13 : vector<8x1xf32> to vector<8x8xf32>
    %15 = arith.subf %11, %14 : vector<8x8xf32>
    %16 = math.exp %15 : vector<8x8xf32>
    %cst_10 = arith.constant dense<0.000000e+00> : vector<8xf32>
    %17 = vector.multi_reduction <add>, %16, %cst_10 [1] : vector<8x8xf32> to vector<8xf32>
    %18 = vector.shape_cast %17 : vector<8xf32> to vector<8x1xf32>
    %19 = tpu.reciprocal %18 {approx = true} : vector<8x1xf32> -> vector<8x1xf32>
    %20 = vector.broadcast %19 : vector<8x1xf32> to vector<8x8xf32>
    %21 = arith.mulf %16, %20 : vector<8x8xf32>
    %cst_11 = arith.constant dense<0.000000e+00> : vector<8x8xf32>
    %22 = tpu.matmul %21, %8, %cst_11 {dimension_numbers = #tpu.dot_dimension_numbers<[1], [0], [0], [1], [0, 0, 1, 1], [], []>} : vector<8x8xf32>, vector<8x8xf32>, vector<8x8xf32> -> vector<8x8xf32>
    %c0_12 = arith.constant 0 : index
    %c0_13 = arith.constant 0 : index
    %23 = vector.load %arg4[%c0_12, %c0_13] : memref<32x32xf32, #tpu.memory_space<vmem>>, vector<32x8xf32>
    %cst_14 = arith.constant dense<0.000000e+00> : vector<8x32xf32>
    %24 = tpu.matmul %22, %23, %cst_14 {dimension_numbers = #tpu.dot_dimension_numbers<[1], [1], [0], [0], [0, 0, 1, 0], [], []>} : vector<8x8xf32>, vector<32x8xf32>, vector<8x32xf32> -> vector<8x32xf32>
    %25 = arith.addf %7, %24 : vector<8x32xf32>
    %26 = vector.extract_strided_slice %6 {offsets = [0, 8], sizes = [8, 8], strides = [1, 1]} : vector<8x32xf32> to vector<8x8xf32>
    %cst_15 = arith.constant 0.353553385 : f32
    %27 = vector.broadcast %cst_15 : f32 to vector<8x8xf32>
    %28 = arith.mulf %26, %27 : vector<8x8xf32>
    %cst_16 = arith.constant dense<0.000000e+00> : vector<8x8xf32>
    %29 = tpu.matmul %28, %26, %cst_16 {dimension_numbers = #tpu.dot_dimension_numbers<[1], [1], [0], [0], [0, 0, 1, 0], [], []>} : vector<8x8xf32>, vector<8x8xf32>, vector<8x8xf32> -> vector<8x8xf32>
    %cst_17 = arith.constant dense<0xFF800000> : vector<8xf32>
    %30 = vector.multi_reduction <maximumf>, %29, %cst_17 [1] : vector<8x8xf32> to vector<8xf32>
    %31 = vector.shape_cast %30 : vector<8xf32> to vector<8x1xf32>
    %32 = vector.broadcast %31 : vector<8x1xf32> to vector<8x8xf32>
    %33 = arith.subf %29, %32 : vector<8x8xf32>
    %34 = math.exp %33 : vector<8x8xf32>
    %cst_18 = arith.constant dense<0.000000e+00> : vector<8xf32>
    %35 = vector.multi_reduction <add>, %34, %cst_18 [1] : vector<8x8xf32> to vector<8xf32>
    %36 = vector.shape_cast %35 : vector<8xf32> to vector<8x1xf32>
    %37 = tpu.reciprocal %36 {approx = true} : vector<8x1xf32> -> vector<8x1xf32>
    %38 = vector.broadcast %37 : vector<8x1xf32> to vector<8x8xf32>
    %39 = arith.mulf %34, %38 : vector<8x8xf32>
    %cst_19 = arith.constant dense<0.000000e+00> : vector<8x8xf32>
    %40 = tpu.matmul %39, %26, %cst_19 {dimension_numbers = #tpu.dot_dimension_numbers<[1], [0], [0], [1], [0, 0, 1, 1], [], []>} : vector<8x8xf32>, vector<8x8xf32>, vector<8x8xf32> -> vector<8x8xf32>
    %c0_20 = arith.constant 0 : index
    %c8 = arith.constant 8 : index
    %41 = vector.load %arg4[%c0_20, %c8] : memref<32x32xf32, #tpu.memory_space<vmem>>, vector<32x8xf32>
    %cst_21 = arith.constant dense<0.000000e+00> : vector<8x32xf32>
    %42 = tpu.matmul %40, %41, %cst_21 {dimension_numbers = #tpu.dot_dimension_numbers<[1], [1], [0], [0], [0, 0, 1, 0], [], []>} : vector<8x8xf32>, vector<32x8xf32>, vector<8x32xf32> -> vector<8x32xf32>
    %43 = arith.addf %25, %42 : vector<8x32xf32>
    %44 = vector.extract_strided_slice %6 {offsets = [0, 16], sizes = [8, 8], strides = [1, 1]} : vector<8x32xf32> to vector<8x8xf32>
    %cst_22 = arith.constant 0.353553385 : f32
    %45 = vector.broadcast %cst_22 : f32 to vector<8x8xf32>
    %46 = arith.mulf %44, %45 : vector<8x8xf32>
    %cst_23 = arith.constant dense<0.000000e+00> : vector<8x8xf32>
    %47 = tpu.matmul %46, %44, %cst_23 {dimension_numbers = #tpu.dot_dimension_numbers<[1], [1], [0], [0], [0, 0, 1, 0], [], []>} : vector<8x8xf32>, vector<8x8xf32>, vector<8x8xf32> -> vector<8x8xf32>
    %cst_24 = arith.constant dense<0xFF800000> : vector<8xf32>
    %48 = vector.multi_reduction <maximumf>, %47, %cst_24 [1] : vector<8x8xf32> to vector<8xf32>
    %49 = vector.shape_cast %48 : vector<8xf32> to vector<8x1xf32>
    %50 = vector.broadcast %49 : vector<8x1xf32> to vector<8x8xf32>
    %51 = arith.subf %47, %50 : vector<8x8xf32>
    %52 = math.exp %51 : vector<8x8xf32>
    %cst_25 = arith.constant dense<0.000000e+00> : vector<8xf32>
    %53 = vector.multi_reduction <add>, %52, %cst_25 [1] : vector<8x8xf32> to vector<8xf32>
    %54 = vector.shape_cast %53 : vector<8xf32> to vector<8x1xf32>
    %55 = tpu.reciprocal %54 {approx = true} : vector<8x1xf32> -> vector<8x1xf32>
    %56 = vector.broadcast %55 : vector<8x1xf32> to vector<8x8xf32>
    %57 = arith.mulf %52, %56 : vector<8x8xf32>
    %cst_26 = arith.constant dense<0.000000e+00> : vector<8x8xf32>
    %58 = tpu.matmul %57, %44, %cst_26 {dimension_numbers = #tpu.dot_dimension_numbers<[1], [0], [0], [1], [0, 0, 1, 1], [], []>} : vector<8x8xf32>, vector<8x8xf32>, vector<8x8xf32> -> vector<8x8xf32>
    %c0_27 = arith.constant 0 : index
    %c16 = arith.constant 16 : index
    %59 = vector.load %arg4[%c0_27, %c16] : memref<32x32xf32, #tpu.memory_space<vmem>>, vector<32x8xf32>
    %cst_28 = arith.constant dense<0.000000e+00> : vector<8x32xf32>
    %60 = tpu.matmul %58, %59, %cst_28 {dimension_numbers = #tpu.dot_dimension_numbers<[1], [1], [0], [0], [0, 0, 1, 0], [], []>} : vector<8x8xf32>, vector<32x8xf32>, vector<8x32xf32> -> vector<8x32xf32>
    %61 = arith.addf %43, %60 : vector<8x32xf32>
    %62 = vector.extract_strided_slice %6 {offsets = [0, 24], sizes = [8, 8], strides = [1, 1]} : vector<8x32xf32> to vector<8x8xf32>
    %cst_29 = arith.constant 0.353553385 : f32
    %63 = vector.broadcast %cst_29 : f32 to vector<8x8xf32>
    %64 = arith.mulf %62, %63 : vector<8x8xf32>
    %cst_30 = arith.constant dense<0.000000e+00> : vector<8x8xf32>
    %65 = tpu.matmul %64, %62, %cst_30 {dimension_numbers = #tpu.dot_dimension_numbers<[1], [1], [0], [0], [0, 0, 1, 0], [], []>} : vector<8x8xf32>, vector<8x8xf32>, vector<8x8xf32> -> vector<8x8xf32>
    %cst_31 = arith.constant dense<0xFF800000> : vector<8xf32>
    %66 = vector.multi_reduction <maximumf>, %65, %cst_31 [1] : vector<8x8xf32> to vector<8xf32>
    %67 = vector.shape_cast %66 : vector<8xf32> to vector<8x1xf32>
    %68 = vector.broadcast %67 : vector<8x1xf32> to vector<8x8xf32>
    %69 = arith.subf %65, %68 : vector<8x8xf32>
    %70 = math.exp %69 : vector<8x8xf32>
    %cst_32 = arith.constant dense<0.000000e+00> : vector<8xf32>
    %71 = vector.multi_reduction <add>, %70, %cst_32 [1] : vector<8x8xf32> to vector<8xf32>
    %72 = vector.shape_cast %71 : vector<8xf32> to vector<8x1xf32>
    %73 = tpu.reciprocal %72 {approx = true} : vector<8x1xf32> -> vector<8x1xf32>
    %74 = vector.broadcast %73 : vector<8x1xf32> to vector<8x8xf32>
    %75 = arith.mulf %70, %74 : vector<8x8xf32>
    %cst_33 = arith.constant dense<0.000000e+00> : vector<8x8xf32>
    %76 = tpu.matmul %75, %62, %cst_33 {dimension_numbers = #tpu.dot_dimension_numbers<[1], [0], [0], [1], [0, 0, 1, 1], [], []>} : vector<8x8xf32>, vector<8x8xf32>, vector<8x8xf32> -> vector<8x8xf32>
    %c0_34 = arith.constant 0 : index
    %c24 = arith.constant 24 : index
    %77 = vector.load %arg4[%c0_34, %c24] : memref<32x32xf32, #tpu.memory_space<vmem>>, vector<32x8xf32>
    %cst_35 = arith.constant dense<0.000000e+00> : vector<8x32xf32>
    %78 = tpu.matmul %76, %77, %cst_35 {dimension_numbers = #tpu.dot_dimension_numbers<[1], [1], [0], [0], [0, 0, 1, 0], [], []>} : vector<8x8xf32>, vector<32x8xf32>, vector<8x32xf32> -> vector<8x32xf32>
    %79 = arith.addf %61, %78 : vector<8x32xf32>
    %c0_36 = arith.constant 0 : index
    %c0_37 = arith.constant 0 : index
    %80 = vector.load %arg5[%c0_36, %c0_37] : memref<1x32xf32, #tpu.memory_space<vmem>>, vector<1x32xf32>
    %81 = vector.broadcast %80 : vector<1x32xf32> to vector<8x32xf32>
    %82 = arith.addf %79, %81 : vector<8x32xf32>
    %c0_38 = arith.constant 0 : index
    %c0_39 = arith.constant 0 : index
    %c0_40 = arith.constant 0 : index
    %83 = vector.load %arg6[%c0_38, %c0_39, %c0_40] : memref<1x8x32xf32, #tpu.memory_space<vmem>>, vector<1x8x32xf32>
    %84 = vector.shape_cast %83 : vector<1x8x32xf32> to vector<8x32xf32>
    %85 = vector.shape_cast %82 : vector<8x32xf32> to vector<1x8x32xf32>
    tpu.vector_store %arg6[%c0_38, %c0_39, %c0_40], %85 {strides = array<i32>} : memref<1x8x32xf32, #tpu.memory_space<vmem>>, vector<1x8x32xf32>,
    return
  }
  func.func @transform_0(%arg0: i32) -> (i32, i32, i32) {
    %c0_i32 = arith.constant 0 : i32
    %c0_i32_0 = arith.constant 0 : i32
    %c0_i32_1 = arith.constant 0 : i32
    return %arg0, %c0_i32, %c0_i32_0 : i32, i32, i32
  }
  func.func @transform_1(%arg0: i32) -> (i32, i32) {
    %c0_i32 = arith.constant 0 : i32
    %c0_i32_0 = arith.constant 0 : i32
    %c0_i32_1 = arith.constant 0 : i32
    return %c0_i32, %c0_i32_0 : i32, i32
  }
  func.func @transform_2(%arg0: i32) -> (i32, i32) {
    %c0_i32 = arith.constant 0 : i32
    %c0_i32_0 = arith.constant 0 : i32
    %c0_i32_1 = arith.constant 0 : i32
    return %c0_i32, %c0_i32_0 : i32, i32
  }
  func.func @transform_3(%arg0: i32) -> (i32, i32) {
    %c0_i32 = arith.constant 0 : i32
    %c0_i32_0 = arith.constant 0 : i32
    %c0_i32_1 = arith.constant 0 : i32
    return %c0_i32, %c0_i32_0 : i32, i32
  }
  func.func @transform_4(%arg0: i32) -> (i32, i32) {
    %c0_i32 = arith.constant 0 : i32
    %c0_i32_0 = arith.constant 0 : i32
    %c0_i32_1 = arith.constant 0 : i32
    return %c0_i32, %c0_i32_0 : i32, i32
  }
  func.func @transform_5(%arg0: i32) -> (i32, i32, i32) {
    %c0_i32 = arith.constant 0 : i32
    %c0_i32_0 = arith.constant 0 : i32
    %c0_i32_1 = arith.constant 0 : i32
    return %arg0, %c0_i32, %c0_i32_0 : i32, i32, i32
  }
}

</mosaic_0001>

<llo_original>
// kernel: tpu_custom_call.1
$region0: #{tpu_custom_call.1}
  #allocation0 [shape = 'u32[]', space=smem, size = 0x4, offset = 0x4, fixed_abs, tag = 'smem constant byte address 0x4 - core index']
  #allocation1 [shape = 'u32[144,128]{1,0:T(1,128)}', space=vmem, size = 0x12000, scoped, tag = 'internal scratch']
  %s0 = inlined_call_operand.hbm [shape: f32[2,8,32], index: 0, kind: input, shape index: {}]
  %s1 = inlined_call_operand.hbm [shape: f32[32,32], index: 1, kind: input, shape index: {}]
  %s2 = inlined_call_operand.vmem [shape: f32[1,32], index: 2, kind: input, shape index: {}]
  %s3 = inlined_call_operand.hbm [shape: f32[32,32], index: 3, kind: input, shape index: {}]
  %s4 = inlined_call_operand.vmem [shape: f32[1,32], index: 4, kind: input, shape index: {}]
  %s5 = inlined_call_operand.hbm [shape: f32[2,8,32], index: 5, kind: output, shape index: {}]
  %s6 = sld [smem:[#allocation0]]
  $region65: #{tpu_custom_call.1} parent=0
    _
  %s8 = ssub.s32 1, %s6
  %s9 = scalar_select 0, %s8, %s6
  $region1: #{tpu_custom_call.1} parent=0
    #allocation2 [shape = 'u8[8192]{0}', space=vmem, size = 0x2000, scoped, tag = 'input window, operand 0']
    #allocation3 [shape = 's32[2]{0}', space=sflag, size = 0x8, scoped, tag = 'scoped memory for tpu_custom_call.1']
    #allocation4 [shape = 's32[2]{0}', space=sflag, size = 0x8, scoped, tag = 'scoped memory for tpu_custom_call.1']
    #allocation5 [shape = 'u8[16384]{0}', space=vmem, size = 0x4000, scoped, tag = 'input window, operand 1, single buffered']
    #allocation6 [shape = 's32[1]{0}', space=sflag, size = 0x4, scoped, tag = 'scoped memory for tpu_custom_call.1']
    #allocation7 [shape = 'u8[16384]{0}', space=vmem, size = 0x4000, scoped, tag = 'input window, operand 3, single buffered']
    #allocation8 [shape = 'u8[8192]{0}', space=vmem, size = 0x2000, scoped, tag = 'output window, operand 0']
    %10 = vsyncpa [#allocation3], 0
    %s11 = scalar_lea.sflag [#allocation3], 1
    %12 = vsyncpa %s11, 0
    %13 = vsyncpa [#allocation6], 0
    %14 = vsyncpa [#allocation4], 0
    %s15 = scalar_lea.sflag [#allocation4], 1
    %16 = vsyncpa %s15, 0
    loop: start=0, step=1, limit=4
    $region2: #{tpu_custom_call.1} parent=1 // loop_pre_header
      _
    $region3: #{tpu_custom_call.1} parent=1 // loop_header
      %s18 = sphi 0, %s22
      %p19 = scmp.ge.s32.totalorder %s18, 4
      %s28 = sphi 0, %s30
      %s31 = sphi 0, %s28
      %s32 = sphi 0, %s31
      %s48 = sphi 0, %s32
      %s52 = sphi 0, %s52
      %s54 = sphi 0, %s52
      %s55 = sphi 0, %s54
      %s69 = sphi 0, %s55
      %s73 = sphi 0, %s73
      %s75 = sphi 0, %s73
      %s76 = sphi 0, %s75
      %s90 = sphi 0, %s76
      %s94 = sphi 0, %s94
      %s96 = sphi 0, %s94
      %s97 = sphi 0, %s96
      %s111 = sphi 0, %s97
      %s115 = sphi 0, %s115
      %s117 = sphi 0, %s115
      %s118 = sphi 0, %s117
      %s132 = sphi 0, %s118
      %s138 = sphi 0, %s140
      %s141 = sphi 0, %s138
      %s142 = sphi 0, %s141
      %s158 = sphi 0, %s142
    $region4: #{tpu_custom_call.1} parent=1 // loop_header_branch
      %21 = sbr.rel (%p19) target = $region8
    $region5: #{tpu_custom_call.1} parent=1 // loop_body
      %s23 = ssub.s32 %s18, 1
      %s24 = ssub.s32 %s18, 2
      %s25 = sadd.s32 %s18, 1
      %s26 = ssub.s32 %s18, %s25
      %p27 = scmp.eq.s32.totalorder %s26, 0
      %s29 = sadd.s32 %s28, 1
      %s30 = scalar_select %p27, %s28, %s29
      %p33 = pneg %p27
      %p34 = scmp.eq.s32.totalorder %s18, 1
      %p35 = por %p33, %p34
      %p36 = scmp.ne.s32.totalorder %s28, %s31
      %p37 = scmp.eq.s32.totalorder %s18, 0
      %p38 = por %p36, %p37
      %p39 = scmp.ne.s32.totalorder %s28, %s31
      %p40 = scmp.eq.s32.totalorder %s23, 1
      %p41 = por %p39, %p40
      %p42 = scmp.ne.s32.totalorder %s31, %s32
      %p43 = scmp.eq.s32.totalorder %s23, 0
      %p44 = por %p42, %p43
      %p45 = scmp.ne.s32.totalorder %s31, %s32
      %p46 = scmp.eq.s32.totalorder %s24, 1
      %p47 = por %p45, %p46
      %p49 = scmp.ne.s32.totalorder %s32, %s48
      %p50 = scmp.eq.s32.totalorder %s24, 0
      %p51 = por %p49, %p50
      %s53 = sadd.s32 %s52, 1
      %p56 = scmp.eq.s32.totalorder %s18, 1
      %p57 = scmp.ne.s32.totalorder %s52, %s54
      %p58 = scmp.eq.s32.totalorder %s18, 0
      %p59 = por %p57, %p58
      %p60 = scmp.ne.s32.totalorder %s52, %s54
      %p61 = scmp.eq.s32.totalorder %s23, 1
      %p62 = por %p60, %p61
      %p63 = scmp.ne.s32.totalorder %s54, %s55
      %p64 = scmp.eq.s32.totalorder %s23, 0
      %p65 = por %p63, %p64
      %p66 = scmp.ne.s32.totalorder %s54, %s55
      %p67 = scmp.eq.s32.totalorder %s24, 1
      %p68 = por %p66, %p67
      %p70 = scmp.ne.s32.totalorder %s55, %s69
      %p71 = scmp.eq.s32.totalorder %s24, 0
      %p72 = por %p70, %p71
      %s74 = sadd.s32 %s73, 1
      %p77 = scmp.eq.s32.totalorder %s18, 1
      %p78 = scmp.ne.s32.totalorder %s73, %s75
      %p79 = scmp.eq.s32.totalorder %s18, 0
      %p80 = por %p78, %p79
      %p81 = scmp.ne.s32.totalorder %s73, %s75
      %p82 = scmp.eq.s32.totalorder %s23, 1
      %p83 = por %p81, %p82
      %p84 = scmp.ne.s32.totalorder %s75, %s76
      %p85 = scmp.eq.s32.totalorder %s23, 0
      %p86 = por %p84, %p85
      %p87 = scmp.ne.s32.totalorder %s75, %s76
      %p88 = scmp.eq.s32.totalorder %s24, 1
      %p89 = por %p87, %p88
      %p91 = scmp.ne.s32.totalorder %s76, %s90
      %p92 = scmp.eq.s32.totalorder %s24, 0
      %p93 = por %p91, %p92
      %s95 = sadd.s32 %s94, 1
      %p98 = scmp.eq.s32.totalorder %s18, 1
      %p99 = scmp.ne.s32.totalorder %s94, %s96
      %p100 = scmp.eq.s32.totalorder %s18, 0
      %p101 = por %p99, %p100
      %p102 = scmp.ne.s32.totalorder %s94, %s96
      %p103 = scmp.eq.s32.totalorder %s23, 1
      %p104 = por %p102, %p103
      %p105 = scmp.ne.s32.totalorder %s96, %s97
      %p106 = scmp.eq.s32.totalorder %s23, 0
      %p107 = por %p105, %p106
      %p108 = scmp.ne.s32.totalorder %s96, %s97
      %p109 = scmp.eq.s32.totalorder %s24, 1
      %p110 = por %p108, %p109
      %p112 = scmp.ne.s32.totalorder %s97, %s111
      %p113 = scmp.eq.s32.totalorder %s24, 0
      %p114 = por %p112, %p113
      %s116 = sadd.s32 %s115, 1
      %p119 = scmp.eq.s32.totalorder %s18, 1
      %p120 = scmp.ne.s32.totalorder %s115, %s117
      %p121 = scmp.eq.s32.totalorder %s18, 0
      %p122 = por %p120, %p121
      %p123 = scmp.ne.s32.totalorder %s115, %s117
      %p124 = scmp.eq.s32.totalorder %s23, 1
      %p125 = por %p123, %p124
      %p126 = scmp.ne.s32.totalorder %s117, %s118
      %p127 = scmp.eq.s32.totalorder %s23, 0
      %p128 = por %p126, %p127
      %p129 = scmp.ne.s32.totalorder %s117, %s118
      %p130 = scmp.eq.s32.totalorder %s24, 1
      %p131 = por %p129, %p130
      %p133 = scmp.ne.s32.totalorder %s118, %s132
      %p134 = scmp.eq.s32.totalorder %s24, 0
      %p135 = por %p133, %p134
      %s136 = ssub.s32 %s18, %s25
      %p137 = scmp.eq.s32.totalorder %s136, 0
      %s139 = sadd.s32 %s138, 1
      %s140 = scalar_select %p137, %s138, %s139
      %p143 = pneg %p137
      %p144 = scmp.eq.s32.totalorder %s18, 1
      %p145 = por %p143, %p144
      %p146 = scmp.ne.s32.totalorder %s138, %s141
      %p147 = scmp.eq.s32.totalorder %s18, 0
      %p148 = por %p146, %p147
      %p149 = scmp.ne.s32.totalorder %s138, %s141
      %p150 = scmp.eq.s32.totalorder %s23, 1
      %p151 = por %p149, %p150
      %p152 = scmp.ne.s32.totalorder %s141, %s142
      %p153 = scmp.eq.s32.totalorder %s23, 0
      %p154 = por %p152, %p153
      %p155 = scmp.ne.s32.totalorder %s141, %s142
      %p156 = scmp.eq.s32.totalorder %s24, 1
      %p157 = por %p155, %p156
      %p159 = scmp.ne.s32.totalorder %s142, %s158
      %p160 = scmp.eq.s32.totalorder %s24, 0
      %p161 = por %p159, %p160
      %p162 = scmp.le.s32.totalorder 1, %s18
      %p163 = scmp.lt.s32.totalorder %s18, 3
      %p164 = pnand %p162, %p163
      %p165 = pneg %p164
      // Predicated region
      $region9: #{tpu_custom_call.1} parent=5 // pred_check
        _
      $region10: #{tpu_custom_call.1} parent=5 // pred_check_branch
        %167 = sbr.rel (%p164) target = $region12
      $region11: #{tpu_custom_call.1} parent=5 // pred_region
        %s168 = ssub.s32 %s18, 1
        // Predicated region
        $region13: #{tpu_custom_call.1} parent=11 // pred_check
          %p169 = pneg %p65
        $region14: #{tpu_custom_call.1} parent=11 // pred_check_branch
          %171 = sbr.rel (%p169) target = $region16
        $region15: #{tpu_custom_call.1} parent=11 // pred_region
          %s173 = ssub.s32 512, 512
          %174 = vsyncadd [#allocation6], %s173
          %s175 = sshll.u32 [#allocation5], 4
          %s176 = int_to_ptr.vmem [resolvable:$true] %s175
          %181 = dma.hbm_to_vmem [thread:$0]  %s1, 512, %s176, [#allocation6], 128, 128, 8
        $region16: #{tpu_custom_call.1} parent=11 // pred_fallthru
          _
        // Predicated region
        $region17: #{tpu_custom_call.1} parent=11 // pred_check
          %p182 = pneg %p86
        $region18: #{tpu_custom_call.1} parent=11 // pred_check_branch
          %184 = sbr.rel (%p182) target = $region20
        $region19: #{tpu_custom_call.1} parent=11 // pred_region
          _
        $region20: #{tpu_custom_call.1} parent=11 // pred_fallthru
          _
        // Predicated region
        $region21: #{tpu_custom_call.1} parent=11 // pred_check
          %p185 = pneg %p107
        $region22: #{tpu_custom_call.1} parent=11 // pred_check_branch
          %187 = sbr.rel (%p185) target = $region24
        $region23: #{tpu_custom_call.1} parent=11 // pred_region
          %s189 = ssub.s32 512, 512
          %190 = vsyncadd [#allocation6], %s189
          %s191 = sshll.u32 [#allocation7], 4
          %s192 = int_to_ptr.vmem [resolvable:$true] %s191
          %197 = dma.hbm_to_vmem [thread:$0]  %s3, 512, %s192, [#allocation6], 128, 128, 8
        $region24: #{tpu_custom_call.1} parent=11 // pred_fallthru
          _
        // Predicated region
        $region25: #{tpu_custom_call.1} parent=11 // pred_check
          %p198 = pneg %p128
        $region26: #{tpu_custom_call.1} parent=11 // pred_check_branch
          %200 = sbr.rel (%p198) target = $region28
        $region27: #{tpu_custom_call.1} parent=11 // pred_region
          _
        $region28: #{tpu_custom_call.1} parent=11 // pred_fallthru
          _
      $region12: #{tpu_custom_call.1} parent=5 // pred_fallthru
        _
      %p201 = scmp.lt.s32.totalorder %s18, 2
      // Predicated region
      $region29: #{tpu_custom_call.1} parent=5 // pred_check
        %p202 = pneg %p201
      $region30: #{tpu_custom_call.1} parent=5 // pred_check_branch
        %204 = sbr.rel (%p202) target = $region32
      $region31: #{tpu_custom_call.1} parent=5 // pred_region
        // Predicated region
        $region33: #{tpu_custom_call.1} parent=31 // pred_check
          %p205 = pneg %p38
        $region34: #{tpu_custom_call.1} parent=31 // pred_check_branch
          %207 = sbr.rel (%p205) target = $region36
        $region35: #{tpu_custom_call.1} parent=31 // pred_region
          %s208 = sand.u32 %s28, 1
          %s209 = scalar_lea.sflag [#allocation3], %s208
          %s210 = sand.u32 %s28, 1
          %s211 = smul.addr %s210, 8
          %s212 = scalar_lea.vmem [#allocation2], %s211
          %s214 = ssub.s32 128, 128
          %215 = vsyncadd %s209, %s214
          %s216 = smul.addr %s18, 128
          %s217 = scalar_lea.hbm %s0, %s216
          %s219 = sshll.u32 %s212, 4
          %s220 = int_to_ptr.vmem [resolvable:$true] %s219
          %222 = dma.hbm_to_vmem [thread:$0]  %s217, 128, %s220, %s209
        $region36: #{tpu_custom_call.1} parent=31 // pred_fallthru
          _
      $region32: #{tpu_custom_call.1} parent=5 // pred_fallthru
        _
      %p223 = scmp.le.s32.totalorder 1, %s18
      %p224 = scmp.lt.s32.totalorder %s18, 3
      %p225 = pnand %p223, %p224
      %p226 = pneg %p225
      // Predicated region
      $region37: #{tpu_custom_call.1} parent=5 // pred_check
        _
      $region38: #{tpu_custom_call.1} parent=5 // pred_check_branch
        %228 = sbr.rel (%p225) target = $region40
      $region39: #{tpu_custom_call.1} parent=5 // pred_region
        %s229 = ssub.s32 %s18, 1
        %s230 = sand.u32 %s31, 1
        %s231 = scalar_lea.sflag [#allocation3], %s230
        %s232 = sand.u32 %s31, 1
        %s233 = smul.addr %s232, 8
        %s234 = scalar_lea.vmem [#allocation2], %s233
        // Predicated region
        $region41: #{tpu_custom_call.1} parent=39 // pred_check
          %p235 = pneg %p44
        $region42: #{tpu_custom_call.1} parent=39 // pred_check_branch
          %237 = sbr.rel (%p235) target = $region44
        $region43: #{tpu_custom_call.1} parent=39 // pred_region
          %238 = dma.done %s231, 128
        $region44: #{tpu_custom_call.1} parent=39 // pred_fallthru
          _
        // Predicated region
        $region45: #{tpu_custom_call.1} parent=39 // pred_check
          %p239 = pneg %p65
        $region46: #{tpu_custom_call.1} parent=39 // pred_check_branch
          %241 = sbr.rel (%p239) target = $region48
        $region47: #{tpu_custom_call.1} parent=39 // pred_region
          %242 = dma.done [#allocation6], 512
        $region48: #{tpu_custom_call.1} parent=39 // pred_fallthru
          _
        // Predicated region
        $region49: #{tpu_custom_call.1} parent=39 // pred_check
          %p243 = pneg %p107
        $region50: #{tpu_custom_call.1} parent=39 // pred_check_branch
          %245 = sbr.rel (%p243) target = $region52
        $region51: #{tpu_custom_call.1} parent=39 // pred_region
          %246 = dma.done [#allocation6], 512
        $region52: #{tpu_custom_call.1} parent=39 // pred_fallthru
          _
        %s247 = sand.u32 %s31, 1
        %s248 = scalar_lea.sflag [#allocation3], %s247
        %s249 = sand.u32 %s31, 1
        %s250 = smul.addr %s249, 8
        %s251 = scalar_lea.vmem [#allocation2], %s250
        %p252 = pneg %p44
        %p253 = pneg %p41
        %p254 = pneg %p65
        %p255 = pneg %p62
        %p256 = pneg %p86
        %p257 = pneg %p83
        %p258 = pneg %p107
        %p259 = pneg %p104
        %p260 = pneg %p128
        %p261 = pneg %p125
        %p262 = pneg %p154
        %p263 = pneg %p151
        %s264 = sand.u32 %s141, 1
        %s265 = scalar_lea.sflag [#allocation4], %s264
        %s266 = sand.u32 %s141, 1
        %s267 = smul.addr %s266, 8
        %s268 = scalar_lea.vmem [#allocation8], %s267
        %v269 = vld [vmem:[%s234] sm:$0xff]
        %v270 = vld [vmem:[#allocation5] sm:$0xff]
        %v271 = vld [vmem:[#allocation5 + $0x8] sm:$0xff]
        %v272 = vld [vmem:[#allocation5 + $0x10] sm:$0xff]
        %v273 = vld [vmem:[#allocation5 + $0x18] sm:$0xff]
        %v274 = vld [vmem:[%s2] sm:$0x1]
        %v276 = vlaneseq
        %v277 = vshrl.u32 %v276, 7
        %v278 = vsub.s32 0, %v277
        %v279 = vrot.slane %v274, %v278
        %vm281 = vcmask 261120
        %v283 = vsel %vm281, %v269, 0
        %v286 = vsel %vm281, %v270, 0
        %v289 = vsel %vm281, %v271, 0
        %v292 = vsel %vm281, %v272, 0
        %v295 = vsel %vm281, %v273, 0
        %297 = vmatprep.subr.mxu0 0.0
        %298 = vmatpush1.xpose.msra.mxu0 %v286
        %299 = vmatprep.subr.mxu0 0.0
        %300 = vmatpush1.xpose.msra.mxu0 %v289
        %301 = vmatprep.subr.mxu0 0.0
        %302 = vmatpush1.xpose.msra.mxu0 %v292
        %303 = vmatprep.subr.mxu0 0.0
        %304 = vmatpush1.xpose.msra.mxu0 %v295
        %305 = vmatprep.subr.mxu0 0.0
        %306 = vmatpush1.xpose.msra.mxu0 0.0
        %307 = vmatprep.subr.mxu0 0.0
        %308 = vmatpush1.xpose.msra.mxu0 0.0
        %309 = vmatprep.subr.mxu0 0.0
        %310 = vmatpush1.xpose.msra.mxu0 0.0
        %311 = vmatprep.subr.mxu0 0.0
        %312 = vmatpush1.xpose.msra.mxu0 0.0
        %313 = vmatprep.subr.mxu0 0.0
        %314 = vmatpush1.xpose.msra.mxu0 0.0
        %315 = vmatprep.subr.mxu0 0.0
        %316 = vmatpush1.xpose.msra.mxu0 0.0
        %317 = vmatprep.subr.mxu0 0.0
        %318 = vmatpush1.xpose.msra.mxu0 0.0
        %319 = vmatprep.subr.mxu0 0.0
        %320 = vmatpush1.xpose.msra.mxu0 0.0
        %321 = vmatprep.subr.mxu0 0.0
        %322 = vmatpush1.xpose.msra.mxu0 0.0
        %323 = vmatprep.subr.mxu0 0.0
        %324 = vmatpush1.xpose.msra.mxu0 0.0
        %325 = vmatprep.subr.mxu0 0.0
        %326 = vmatpush1.xpose.msra.mxu0 0.0
        %327 = vmatprep.subr.mxu0 0.0
        %328 = vmatpush1.xpose.msra.mxu0 0.0
        %329 = vmatprep.subr.mxu0 0.0
        %330 = vmatpush1.xpose.msra.mxu0 0.0
        %331 = vmatprep.subr.mxu0 0.0
        %332 = vmatpush1.xpose.msra.mxu0 0.0
        %333 = vmatprep.subr.mxu0 0.0
        %334 = vmatpush1.xpose.msra.mxu0 0.0
        %335 = vmatprep.subr.mxu0 0.0
        %336 = vmatpush1.xpose.msra.mxu0 0.0
        %337 = vmatprep.subr.mxu0 0.0
        %338 = vmatpush1.xpose.msra.mxu0 0.0
        %339 = vmatprep.subr.mxu0 0.0
        %340 = vmatpush1.xpose.msra.mxu0 0.0
        %341 = vmatprep.subr.mxu0 0.0
        %342 = vmatpush1.xpose.msra.mxu0 0.0
        %343 = vmatprep.subr.mxu0 0.0
        %344 = vmatpush1.xpose.msra.mxu0 0.0
        %345 = vmatprep.subr.mxu0 0.0
        %346 = vmatpush1.xpose.msra.mxu0 0.0
        %347 = vmatprep.subr.mxu0 0.0
        %348 = vmatpush1.xpose.msra.mxu0 0.0
        %349 = vmatprep.subr.mxu0 0.0
        %350 = vmatpush1.xpose.msra.mxu0 0.0
        %351 = vmatprep.subr.mxu0 0.0
        %352 = vmatpush1.xpose.msra.mxu0 0.0
        %353 = vmatprep.subr.mxu0 0.0
        %354 = vmatpush1.xpose.msra.mxu0 0.0
        %355 = vmatprep.subr.mxu0 0.0
        %356 = vmatpush1.xpose.msra.mxu0 0.0
        %357 = vmatprep.subr.mxu0 0.0
        %358 = vmatpush1.xpose.msra.mxu0 0.0
        %359 = vmatprep.subr.mxu0 0.0
        %360 = vmatpush1.xpose.msra.mxu0 0.0
        %361 = vmatprep.mubr.f32.mxu0 0.0
        %362 = vmatmul.mubr.f32.gmra.mrb[0].mxu0 %v283
        %v363 = vpop.f32.mrb[0].mxu0
        %v364 = vadd.f32 %v279, %v363
        %v365 = vpop.f32.mrb[0].mxu0
        %366 = vdwg.mxu0
        %v367 = vmul.f32 %v364, 0.35355338
        %vm368 = vcmask 64512
        %v370 = vsel %vm368, %v367, 0
        %v373 = vsel %vm368, %v364, 0
        %375 = vmatprep.subr.mxu0 0.0
        %376 = vmatpush1.xpose.msra.mxu0 %v373
        %377 = vmatprep.subr.mxu0 0.0
        %378 = vmatpush1.xpose.msra.mxu0 0.0
        %379 = vmatprep.subr.mxu0 0.0
        %380 = vmatpush1.xpose.msra.mxu0 0.0
        %381 = vmatprep.subr.mxu0 0.0
        %382 = vmatpush1.xpose.msra.mxu0 0.0
        %383 = vmatprep.subr.mxu0 0.0
        %384 = vmatpush1.xpose.msra.mxu0 0.0
        %385 = vmatprep.subr.mxu0 0.0
        %386 = vmatpush1.xpose.msra.mxu0 0.0
        %387 = vmatprep.subr.mxu0 0.0
        %388 = vmatpush1.xpose.msra.mxu0 0.0
        %389 = vmatprep.subr.mxu0 0.0
        %390 = vmatpush1.xpose.msra.mxu0 0.0
        %391 = vmatprep.subr.mxu0 0.0
        %392 = vmatpush1.xpose.msra.mxu0 0.0
        %393 = vmatprep.subr.mxu0 0.0
        %394 = vmatpush1.xpose.msra.mxu0 0.0
        %395 = vmatprep.subr.mxu0 0.0
        %396 = vmatpush1.xpose.msra.mxu0 0.0
        %397 = vmatprep.subr.mxu0 0.0
        %398 = vmatpush1.xpose.msra.mxu0 0.0
        %399 = vmatprep.subr.mxu0 0.0
        %400 = vmatpush1.xpose.msra.mxu0 0.0
        %401 = vmatprep.subr.mxu0 0.0
        %402 = vmatpush1.xpose.msra.mxu0 0.0
        %403 = vmatprep.subr.mxu0 0.0
        %404 = vmatpush1.xpose.msra.mxu0 0.0
        %405 = vmatprep.subr.mxu0 0.0
        %406 = vmatpush1.xpose.msra.mxu0 0.0
        %407 = vmatprep.subr.mxu0 0.0
        %408 = vmatpush1.xpose.msra.mxu0 0.0
        %409 = vmatprep.subr.mxu0 0.0
        %410 = vmatpush1.xpose.msra.mxu0 0.0
        %411 = vmatprep.subr.mxu0 0.0
        %412 = vmatpush1.xpose.msra.mxu0 0.0
        %413 = vmatprep.subr.mxu0 0.0
        %414 = vmatpush1.xpose.msra.mxu0 0.0
        %415 = vmatprep.subr.mxu0 0.0
        %416 = vmatpush1.xpose.msra.mxu0 0.0
        %417 = vmatprep.subr.mxu0 0.0
        %418 = vmatpush1.xpose.msra.mxu0 0.0
        %419 = vmatprep.subr.mxu0 0.0
        %420 = vmatpush1.xpose.msra.mxu0 0.0
        %421 = vmatprep.subr.mxu0 0.0
        %422 = vmatpush1.xpose.msra.mxu0 0.0
        %423 = vmatprep.subr.mxu0 0.0
        %424 = vmatpush1.xpose.msra.mxu0 0.0
        %425 = vmatprep.subr.mxu0 0.0
        %426 = vmatpush1.xpose.msra.mxu0 0.0
        %427 = vmatprep.subr.mxu0 0.0
        %428 = vmatpush1.xpose.msra.mxu0 0.0
        %429 = vmatprep.subr.mxu0 0.0
        %430 = vmatpush1.xpose.msra.mxu0 0.0
        %431 = vmatprep.subr.mxu0 0.0
        %432 = vmatpush1.xpose.msra.mxu0 0.0
        %433 = vmatprep.subr.mxu0 0.0
        %434 = vmatpush1.xpose.msra.mxu0 0.0
        %435 = vmatprep.subr.mxu0 0.0
        %436 = vmatpush1.xpose.msra.mxu0 0.0
        %437 = vmatprep.subr.mxu0 0.0
        %438 = vmatpush1.xpose.msra.mxu0 0.0
        %439 = vmatprep.mubr.f32.mxu0 0.0
        %440 = vmatmul.mubr.f32.gmra.mrb[0].mxu0 %v370
        %v441 = vpop.f32.mrb[0].mxu0
        %v442 = vadd.f32 0.0, %v441
        %v443 = vpop.f32.mrb[0].mxu0
        %444 = vdwg.mxu0
        %v445 = vsel %vm368, %v442, -inf
        %446 = vmax.xlane.f32.xlu0 %v445
        %v447 = vpop.xlane.xlu0 %446
        %v448 = vsub.f32 %v442, %v447
        %v449 = vmul.f32 %v448, 1.442695
        %v450 = vpow.pop %v449
        %v451 = vsel %vm368, %v450, 0.0
        %452 = vadd.xlane.f32.xlu0 %v451
        %v453 = vpop.xlane.xlu0 %452
        %v454 = vrcp.pop %v453
        %v455 = vmul.f32 %v450, %v454
        %v457 = vsel %vm368, %v455, 0
        %459 = vmatprep.subr.mxu0 0.0
        %460 = vmatpush1.msra.mxu0 %v364
        %461 = vmatprep.subr.mxu0 0.0
        %462 = vmatpush1.msra.mxu0 0.0
        %463 = vmatprep.subr.mxu0 0.0
        %464 = vmatpush1.msra.mxu0 0.0
        %465 = vmatprep.subr.mxu0 0.0
        %466 = vmatpush1.msra.mxu0 0.0
        %467 = vmatprep.subr.mxu0 0.0
        %468 = vmatpush1.msra.mxu0 0.0
        %469 = vmatprep.subr.mxu0 0.0
        %470 = vmatpush1.msra.mxu0 0.0
        %471 = vmatprep.subr.mxu0 0.0
        %472 = vmatpush1.msra.mxu0 0.0
        %473 = vmatprep.subr.mxu0 0.0
        %474 = vmatpush1.msra.mxu0 0.0
        %475 = vmatprep.subr.mxu0 0.0
        %476 = vmatpush1.msra.mxu0 0.0
        %477 = vmatprep.subr.mxu0 0.0
        %478 = vmatpush1.msra.mxu0 0.0
        %479 = vmatprep.subr.mxu0 0.0
        %480 = vmatpush1.msra.mxu0 0.0
        %481 = vmatprep.subr.mxu0 0.0
        %482 = vmatpush1.msra.mxu0 0.0
        %483 = vmatprep.subr.mxu0 0.0
        %484 = vmatpush1.msra.mxu0 0.0
        %485 = vmatprep.subr.mxu0 0.0
        %486 = vmatpush1.msra.mxu0 0.0
        %487 = vmatprep.subr.mxu0 0.0
        %488 = vmatpush1.msra.mxu0 0.0
        %489 = vmatprep.subr.mxu0 0.0
        %490 = vmatpush1.msra.mxu0 0.0
        %491 = vmatprep.subr.mxu0 0.0
        %492 = vmatpush1.msra.mxu0 0.0
        %493 = vmatprep.subr.mxu0 0.0
        %494 = vmatpush1.msra.mxu0 0.0
        %495 = vmatprep.subr.mxu0 0.0
        %496 = vmatpush1.msra.mxu0 0.0
        %497 = vmatprep.subr.mxu0 0.0
        %498 = vmatpush1.msra.mxu0 0.0
        %499 = vmatprep.subr.mxu0 0.0
        %500 = vmatpush1.msra.mxu0 0.0
        %501 = vmatprep.subr.mxu0 0.0
        %502 = vmatpush1.msra.mxu0 0.0
        %503 = vmatprep.subr.mxu0 0.0
        %504 = vmatpush1.msra.mxu0 0.0
        %505 = vmatprep.subr.mxu0 0.0
        %506 = vmatpush1.msra.mxu0 0.0
        %507 = vmatprep.subr.mxu0 0.0
        %508 = vmatpush1.msra.mxu0 0.0
        %509 = vmatprep.subr.mxu0 0.0
        %510 = vmatpush1.msra.mxu0 0.0
        %511 = vmatprep.subr.mxu0 0.0
        %512 = vmatpush1.msra.mxu0 0.0
        %513 = vmatprep.subr.mxu0 0.0
        %514 = vmatpush1.msra.mxu0 0.0
        %515 = vmatprep.subr.mxu0 0.0
        %516 = vmatpush1.msra.mxu0 0.0
        %517 = vmatprep.subr.mxu0 0.0
        %518 = vmatpush1.msra.mxu0 0.0
        %519 = vmatprep.subr.mxu0 0.0
        %520 = vmatpush1.msra.mxu0 0.0
        %521 = vmatprep.subr.mxu0 0.0
        %522 = vmatpush1.msra.mxu0 0.0
        %523 = vmatprep.mubr.f32.mxu0 0.0
        %524 = vmatmul.mubr.f32.gmra.mrb[0].mxu0 %v457
        %v525 = vpop.f32.mrb[0].mxu0
        %v526 = vadd.f32 0.0, %v525
        %v527 = vpop.f32.mrb[0].mxu0
        %528 = vdwg.mxu0
        %v529 = vld [vmem:[#allocation7] sm:$0xff]
        %v530 = vld [vmem:[#allocation7 + $0x8] sm:$0xff]
        %v531 = vld [vmem:[#allocation7 + $0x10] sm:$0xff]
        %v532 = vld [vmem:[#allocation7 + $0x18] sm:$0xff]
        %533 = vrot.lane.b32.xlu0 %v367, 120
        %v534 = vpop.permute.xlu0 %533
        %535 = vrot.lane.b32.xlu0 %v364, 120
        %v536 = vpop.permute.xlu0 %535
        %v537 = vsel %vm368, %v534, 0
        %v539 = vsel %vm368, %v536, 0
        %541 = vmatprep.subr.mxu0 0.0
        %542 = vmatpush1.xpose.msra.mxu0 %v539
        %543 = vmatprep.subr.mxu0 0.0
        %544 = vmatpush1.xpose.msra.mxu0 0.0
        %545 = vmatprep.subr.mxu0 0.0
        %546 = vmatpush1.xpose.msra.mxu0 0.0
        %547 = vmatprep.subr.mxu0 0.0
        %548 = vmatpush1.xpose.msra.mxu0 0.0
        %549 = vmatprep.subr.mxu0 0.0
        %550 = vmatpush1.xpose.msra.mxu0 0.0
        %551 = vmatprep.subr.mxu0 0.0
        %552 = vmatpush1.xpose.msra.mxu0 0.0
        %553 = vmatprep.subr.mxu0 0.0
        %554 = vmatpush1.xpose.msra.mxu0 0.0
        %555 = vmatprep.subr.mxu0 0.0
        %556 = vmatpush1.xpose.msra.mxu0 0.0
        %557 = vmatprep.subr.mxu0 0.0
        %558 = vmatpush1.xpose.msra.mxu0 0.0
        %559 = vmatprep.subr.mxu0 0.0
        %560 = vmatpush1.xpose.msra.mxu0 0.0
        %561 = vmatprep.subr.mxu0 0.0
        %562 = vmatpush1.xpose.msra.mxu0 0.0
        %563 = vmatprep.subr.mxu0 0.0
        %564 = vmatpush1.xpose.msra.mxu0 0.0
        %565 = vmatprep.subr.mxu0 0.0
        %566 = vmatpush1.xpose.msra.mxu0 0.0
        %567 = vmatprep.subr.mxu0 0.0
        %568 = vmatpush1.xpose.msra.mxu0 0.0
        %569 = vmatprep.subr.mxu0 0.0
        %570 = vmatpush1.xpose.msra.mxu0 0.0
        %571 = vmatprep.subr.mxu0 0.0
        %572 = vmatpush1.xpose.msra.mxu0 0.0
        %573 = vmatprep.subr.mxu0 0.0
        %574 = vmatpush1.xpose.msra.mxu0 0.0
        %575 = vmatprep.subr.mxu0 0.0
        %576 = vmatpush1.xpose.msra.mxu0 0.0
        %577 = vmatprep.subr.mxu0 0.0
        %578 = vmatpush1.xpose.msra.mxu0 0.0
        %579 = vmatprep.subr.mxu0 0.0
        %580 = vmatpush1.xpose.msra.mxu0 0.0
        %581 = vmatprep.subr.mxu0 0.0
        %582 = vmatpush1.xpose.msra.mxu0 0.0
        %583 = vmatprep.subr.mxu0 0.0
        %584 = vmatpush1.xpose.msra.mxu0 0.0
        %585 = vmatprep.subr.mxu0 0.0
        %586 = vmatpush1.xpose.msra.mxu0 0.0
        %587 = vmatprep.subr.mxu0 0.0
        %588 = vmatpush1.xpose.msra.mxu0 0.0
        %589 = vmatprep.subr.mxu0 0.0
        %590 = vmatpush1.xpose.msra.mxu0 0.0
        %591 = vmatprep.subr.mxu0 0.0
        %592 = vmatpush1.xpose.msra.mxu0 0.0
        %593 = vmatprep.subr.mxu0 0.0
        %594 = vmatpush1.xpose.msra.mxu0 0.0
        %595 = vmatprep.subr.mxu0 0.0
        %596 = vmatpush1.xpose.msra.mxu0 0.0
        %597 = vmatprep.subr.mxu0 0.0
        %598 = vmatpush1.xpose.msra.mxu0 0.0
        %599 = vmatprep.subr.mxu0 0.0
        %600 = vmatpush1.xpose.msra.mxu0 0.0
        %601 = vmatprep.subr.mxu0 0.0
        %602 = vmatpush1.xpose.msra.mxu0 0.0
        %603 = vmatprep.subr.mxu0 0.0
        %604 = vmatpush1.xpose.msra.mxu0 0.0
        %605 = vmatprep.mubr.f32.mxu0 0.0
        %606 = vmatmul.mubr.f32.gmra.mrb[0].mxu0 %v537
        %v607 = vpop.f32.mrb[0].mxu0
        %v608 = vadd.f32 0.0, %v607
        %v609 = vpop.f32.mrb[0].mxu0
        %610 = vdwg.mxu0
        %v611 = vsel %vm368, %v608, -inf
        %612 = vmax.xlane.f32.xlu0 %v611
        %v613 = vpop.xlane.xlu0 %612
        %v614 = vsub.f32 %v608, %v613
        %v615 = vmul.f32 %v614, 1.442695
        %v616 = vpow.pop %v615
        %v617 = vsel %vm368, %v616, 0.0
        %618 = vadd.xlane.f32.xlu0 %v617
        %v619 = vpop.xlane.xlu0 %618
        %v620 = vrcp.pop %v619
        %v621 = vmul.f32 %v616, %v620
        %v624 = vsel %vm368, %v621, 0
        %626 = vmatprep.subr.mxu0 0.0
        %627 = vmatpush1.msra.mxu0 %v536
        %628 = vmatprep.subr.mxu0 0.0
        %629 = vmatpush1.msra.mxu0 0.0
        %630 = vmatprep.subr.mxu0 0.0
        %631 = vmatpush1.msra.mxu0 0.0
        %632 = vmatprep.subr.mxu0 0.0
        %633 = vmatpush1.msra.mxu0 0.0
        %634 = vmatprep.subr.mxu0 0.0
        %635 = vmatpush1.msra.mxu0 0.0
        %636 = vmatprep.subr.mxu0 0.0
        %637 = vmatpush1.msra.mxu0 0.0
        %638 = vmatprep.subr.mxu0 0.0
        %639 = vmatpush1.msra.mxu0 0.0
        %640 = vmatprep.subr.mxu0 0.0
        %641 = vmatpush1.msra.mxu0 0.0
        %642 = vmatprep.subr.mxu0 0.0
        %643 = vmatpush1.msra.mxu0 0.0
        %644 = vmatprep.subr.mxu0 0.0
        %645 = vmatpush1.msra.mxu0 0.0
        %646 = vmatprep.subr.mxu0 0.0
        %647 = vmatpush1.msra.mxu0 0.0
        %648 = vmatprep.subr.mxu0 0.0
        %649 = vmatpush1.msra.mxu0 0.0
        %650 = vmatprep.subr.mxu0 0.0
        %651 = vmatpush1.msra.mxu0 0.0
        %652 = vmatprep.subr.mxu0 0.0
        %653 = vmatpush1.msra.mxu0 0.0
        %654 = vmatprep.subr.mxu0 0.0
        %655 = vmatpush1.msra.mxu0 0.0
        %656 = vmatprep.subr.mxu0 0.0
        %657 = vmatpush1.msra.mxu0 0.0
        %658 = vmatprep.subr.mxu0 0.0
        %659 = vmatpush1.msra.mxu0 0.0
        %660 = vmatprep.subr.mxu0 0.0
        %661 = vmatpush1.msra.mxu0 0.0
        %662 = vmatprep.subr.mxu0 0.0
        %663 = vmatpush1.msra.mxu0 0.0
        %664 = vmatprep.subr.mxu0 0.0
        %665 = vmatpush1.msra.mxu0 0.0
        %666 = vmatprep.subr.mxu0 0.0
        %667 = vmatpush1.msra.mxu0 0.0
        %668 = vmatprep.subr.mxu0 0.0
        %669 = vmatpush1.msra.mxu0 0.0
        %670 = vmatprep.subr.mxu0 0.0
        %671 = vmatpush1.msra.mxu0 0.0
        %672 = vmatprep.subr.mxu0 0.0
        %673 = vmatpush1.msra.mxu0 0.0
        %674 = vmatprep.subr.mxu0 0.0
        %675 = vmatpush1.msra.mxu0 0.0
        %676 = vmatprep.subr.mxu0 0.0
        %677 = vmatpush1.msra.mxu0 0.0
        %678 = vmatprep.subr.mxu0 0.0
        %679 = vmatpush1.msra.mxu0 0.0
        %680 = vmatprep.subr.mxu0 0.0
        %681 = vmatpush1.msra.mxu0 0.0
        %682 = vmatprep.subr.mxu0 0.0
        %683 = vmatpush1.msra.mxu0 0.0
        %684 = vmatprep.subr.mxu0 0.0
        %685 = vmatpush1.msra.mxu0 0.0
        %686 = vmatprep.subr.mxu0 0.0
        %687 = vmatpush1.msra.mxu0 0.0
        %688 = vmatprep.subr.mxu0 0.0
        %689 = vmatpush1.msra.mxu0 0.0
        %690 = vmatprep.mubr.f32.mxu0 0.0
        %691 = vmatmul.mubr.f32.gmra.mrb[0].mxu0 %v624
        %v692 = vpop.f32.mrb[0].mxu0
        %v693 = vadd.f32 0.0, %v692
        %v694 = vpop.f32.mrb[0].mxu0
        %695 = vdwg.mxu0
        %700 = vrot.lane.b32.xlu0 %v529, 120
        %v701 = vpop.permute.xlu0 %700
        %702 = vrot.lane.b32.xlu0 %v530, 120
        %v703 = vpop.permute.xlu0 %702
        %704 = vrot.lane.b32.xlu0 %v531, 120
        %v705 = vpop.permute.xlu0 %704
        %706 = vrot.lane.b32.xlu0 %v532, 120
        %v707 = vpop.permute.xlu0 %706
        %v709 = vsel %vm368, %v693, 0
        %v711 = vsel %vm368, %v701, 0
        %v713 = vsel %vm368, %v703, 0
        %v715 = vsel %vm368, %v705, 0
        %v717 = vsel %vm368, %v707, 0
        %719 = vmatprep.subr.mxu0 0.0
        %720 = vmatpush1.xpose.msra.mxu0 %v711
        %721 = vmatprep.subr.mxu0 0.0
        %722 = vmatpush1.xpose.msra.mxu0 %v713
        %723 = vmatprep.subr.mxu0 0.0
        %724 = vmatpush1.xpose.msra.mxu0 %v715
        %725 = vmatprep.subr.mxu0 0.0
        %726 = vmatpush1.xpose.msra.mxu0 %v717
        %727 = vmatprep.subr.mxu0 0.0
        %728 = vmatpush1.xpose.msra.mxu0 0.0
        %729 = vmatprep.subr.mxu0 0.0
        %730 = vmatpush1.xpose.msra.mxu0 0.0
        %731 = vmatprep.subr.mxu0 0.0
        %732 = vmatpush1.xpose.msra.mxu0 0.0
        %733 = vmatprep.subr.mxu0 0.0
        %734 = vmatpush1.xpose.msra.mxu0 0.0
        %735 = vmatprep.subr.mxu0 0.0
        %736 = vmatpush1.xpose.msra.mxu0 0.0
        %737 = vmatprep.subr.mxu0 0.0
        %738 = vmatpush1.xpose.msra.mxu0 0.0
        %739 = vmatprep.subr.mxu0 0.0
        %740 = vmatpush1.xpose.msra.mxu0 0.0
        %741 = vmatprep.subr.mxu0 0.0
        %742 = vmatpush1.xpose.msra.mxu0 0.0
        %743 = vmatprep.subr.mxu0 0.0
        %744 = vmatpush1.xpose.msra.mxu0 0.0
        %745 = vmatprep.subr.mxu0 0.0
        %746 = vmatpush1.xpose.msra.mxu0 0.0
        %747 = vmatprep.subr.mxu0 0.0
        %748 = vmatpush1.xpose.msra.mxu0 0.0
        %749 = vmatprep.subr.mxu0 0.0
        %750 = vmatpush1.xpose.msra.mxu0 0.0
        %751 = vmatprep.subr.mxu0 0.0
        %752 = vmatpush1.xpose.msra.mxu0 0.0
        %753 = vmatprep.subr.mxu0 0.0
        %754 = vmatpush1.xpose.msra.mxu0 0.0
        %755 = vmatprep.subr.mxu0 0.0
        %756 = vmatpush1.xpose.msra.mxu0 0.0
        %757 = vmatprep.subr.mxu0 0.0
        %758 = vmatpush1.xpose.msra.mxu0 0.0
        %759 = vmatprep.subr.mxu0 0.0
        %760 = vmatpush1.xpose.msra.mxu0 0.0
        %761 = vmatprep.subr.mxu0 0.0
        %762 = vmatpush1.xpose.msra.mxu0 0.0
        %763 = vmatprep.subr.mxu0 0.0
        %764 = vmatpush1.xpose.msra.mxu0 0.0
        %765 = vmatprep.subr.mxu0 0.0
        %766 = vmatpush1.xpose.msra.mxu0 0.0
        %767 = vmatprep.subr.mxu0 0.0
        %768 = vmatpush1.xpose.msra.mxu0 0.0
        %769 = vmatprep.subr.mxu0 0.0
        %770 = vmatpush1.xpose.msra.mxu0 0.0
        %771 = vmatprep.subr.mxu0 0.0
        %772 = vmatpush1.xpose.msra.mxu0 0.0
        %773 = vmatprep.subr.mxu0 0.0
        %774 = vmatpush1.xpose.msra.mxu0 0.0
        %775 = vmatprep.subr.mxu0 0.0
        %776 = vmatpush1.xpose.msra.mxu0 0.0
        %777 = vmatprep.subr.mxu0 0.0
        %778 = vmatpush1.xpose.msra.mxu0 0.0
        %779 = vmatprep.subr.mxu0 0.0
        %780 = vmatpush1.xpose.msra.mxu0 0.0
        %781 = vmatprep.subr.mxu0 0.0
        %782 = vmatpush1.xpose.msra.mxu0 0.0
        %783 = vmatprep.mubr.f32.mxu0 0.0
        %784 = vmatmul.mubr.f32.gmra.mrb[0].mxu0 %v709
        %v785 = vpop.f32.mrb[0].mxu0
        %v786 = vadd.f32 0.0, %v785
        %v787 = vpop.f32.mrb[0].mxu0
        %788 = vdwg.mxu0
        %v790 = vsel %vm368, %v526, 0
        %v792 = vsel %vm368, %v529, 0
        %v794 = vsel %vm368, %v530, 0
        %v796 = vsel %vm368, %v531, 0
        %v798 = vsel %vm368, %v532, 0
        %800 = vmatprep.subr.mxu0 0.0
        %801 = vmatpush1.xpose.msra.mxu0 %v792
        %802 = vmatprep.subr.mxu0 0.0
        %803 = vmatpush1.xpose.msra.mxu0 %v794
        %804 = vmatprep.subr.mxu0 0.0
        %805 = vmatpush1.xpose.msra.mxu0 %v796
        %806 = vmatprep.subr.mxu0 0.0
        %807 = vmatpush1.xpose.msra.mxu0 %v798
        %808 = vmatprep.subr.mxu0 0.0
        %809 = vmatpush1.xpose.msra.mxu0 0.0
        %810 = vmatprep.subr.mxu0 0.0
        %811 = vmatpush1.xpose.msra.mxu0 0.0
        %812 = vmatprep.subr.mxu0 0.0
        %813 = vmatpush1.xpose.msra.mxu0 0.0
        %814 = vmatprep.subr.mxu0 0.0
        %815 = vmatpush1.xpose.msra.mxu0 0.0
        %816 = vmatprep.subr.mxu0 0.0
        %817 = vmatpush1.xpose.msra.mxu0 0.0
        %818 = vmatprep.subr.mxu0 0.0
        %819 = vmatpush1.xpose.msra.mxu0 0.0
        %820 = vmatprep.subr.mxu0 0.0
        %821 = vmatpush1.xpose.msra.mxu0 0.0
        %822 = vmatprep.subr.mxu0 0.0
        %823 = vmatpush1.xpose.msra.mxu0 0.0
        %824 = vmatprep.subr.mxu0 0.0
        %825 = vmatpush1.xpose.msra.mxu0 0.0
        %826 = vmatprep.subr.mxu0 0.0
        %827 = vmatpush1.xpose.msra.mxu0 0.0
        %828 = vmatprep.subr.mxu0 0.0
        %829 = vmatpush1.xpose.msra.mxu0 0.0
        %830 = vmatprep.subr.mxu0 0.0
        %831 = vmatpush1.xpose.msra.mxu0 0.0
        %832 = vmatprep.subr.mxu0 0.0
        %833 = vmatpush1.xpose.msra.mxu0 0.0
        %834 = vmatprep.subr.mxu0 0.0
        %835 = vmatpush1.xpose.msra.mxu0 0.0
        %836 = vmatprep.subr.mxu0 0.0
        %837 = vmatpush1.xpose.msra.mxu0 0.0
        %838 = vmatprep.subr.mxu0 0.0
        %839 = vmatpush1.xpose.msra.mxu0 0.0
        %840 = vmatprep.subr.mxu0 0.0
        %841 = vmatpush1.xpose.msra.mxu0 0.0
        %842 = vmatprep.subr.mxu0 0.0
        %843 = vmatpush1.xpose.msra.mxu0 0.0
        %844 = vmatprep.subr.mxu0 0.0
        %845 = vmatpush1.xpose.msra.mxu0 0.0
        %846 = vmatprep.subr.mxu0 0.0
        %847 = vmatpush1.xpose.msra.mxu0 0.0
        %848 = vmatprep.subr.mxu0 0.0
        %849 = vmatpush1.xpose.msra.mxu0 0.0
        %850 = vmatprep.subr.mxu0 0.0
        %851 = vmatpush1.xpose.msra.mxu0 0.0
        %852 = vmatprep.subr.mxu0 0.0
        %853 = vmatpush1.xpose.msra.mxu0 0.0
        %854 = vmatprep.subr.mxu0 0.0
        %855 = vmatpush1.xpose.msra.mxu0 0.0
        %856 = vmatprep.subr.mxu0 0.0
        %857 = vmatpush1.xpose.msra.mxu0 0.0
        %858 = vmatprep.subr.mxu0 0.0
        %859 = vmatpush1.xpose.msra.mxu0 0.0
        %860 = vmatprep.subr.mxu0 0.0
        %861 = vmatpush1.xpose.msra.mxu0 0.0
        %862 = vmatprep.subr.mxu0 0.0
        %863 = vmatpush1.xpose.msra.mxu0 0.0
        %864 = vmatprep.mubr.f32.mxu0 0.0
        %865 = vmatmul.mubr.f32.gmra.mrb[0].mxu0 %v790
        %v866 = vpop.f32.mrb[0].mxu0
        %v867 = vadd.f32 %v786, %v866
        %v868 = vpop.f32.mrb[0].mxu0
        %869 = vdwg.mxu0
        %870 = vrot.lane.b32.xlu0 %v367, 112
        %v871 = vpop.permute.xlu0 %870
        %872 = vrot.lane.b32.xlu0 %v364, 112
        %v873 = vpop.permute.xlu0 %872
        %v874 = vsel %vm368, %v871, 0
        %v876 = vsel %vm368, %v873, 0
        %878 = vmatprep.subr.mxu0 0.0
        %879 = vmatpush1.xpose.msra.mxu0 %v876
        %880 = vmatprep.subr.mxu0 0.0
        %881 = vmatpush1.xpose.msra.mxu0 0.0
        %882 = vmatprep.subr.mxu0 0.0
        %883 = vmatpush1.xpose.msra.mxu0 0.0
        %884 = vmatprep.subr.mxu0 0.0
        %885 = vmatpush1.xpose.msra.mxu0 0.0
        %886 = vmatprep.subr.mxu0 0.0
        %887 = vmatpush1.xpose.msra.mxu0 0.0
        %888 = vmatprep.subr.mxu0 0.0
        %889 = vmatpush1.xpose.msra.mxu0 0.0
        %890 = vmatprep.subr.mxu0 0.0
        %891 = vmatpush1.xpose.msra.mxu0 0.0
        %892 = vmatprep.subr.mxu0 0.0
        %893 = vmatpush1.xpose.msra.mxu0 0.0
        %894 = vmatprep.subr.mxu0 0.0
        %895 = vmatpush1.xpose.msra.mxu0 0.0
        %896 = vmatprep.subr.mxu0 0.0
        %897 = vmatpush1.xpose.msra.mxu0 0.0
        %898 = vmatprep.subr.mxu0 0.0
        %899 = vmatpush1.xpose.msra.mxu0 0.0
        %900 = vmatprep.subr.mxu0 0.0
        %901 = vmatpush1.xpose.msra.mxu0 0.0
        %902 = vmatprep.subr.mxu0 0.0
        %903 = vmatpush1.xpose.msra.mxu0 0.0
        %904 = vmatprep.subr.mxu0 0.0
        %905 = vmatpush1.xpose.msra.mxu0 0.0
        %906 = vmatprep.subr.mxu0 0.0
        %907 = vmatpush1.xpose.msra.mxu0 0.0
        %908 = vmatprep.subr.mxu0 0.0
        %909 = vmatpush1.xpose.msra.mxu0 0.0
        %910 = vmatprep.subr.mxu0 0.0
        %911 = vmatpush1.xpose.msra.mxu0 0.0
        %912 = vmatprep.subr.mxu0 0.0
        %913 = vmatpush1.xpose.msra.mxu0 0.0
        %914 = vmatprep.subr.mxu0 0.0
        %915 = vmatpush1.xpose.msra.mxu0 0.0
        %916 = vmatprep.subr.mxu0 0.0
        %917 = vmatpush1.xpose.msra.mxu0 0.0
        %918 = vmatprep.subr.mxu0 0.0
        %919 = vmatpush1.xpose.msra.mxu0 0.0
        %920 = vmatprep.subr.mxu0 0.0
        %921 = vmatpush1.xpose.msra.mxu0 0.0
        %922 = vmatprep.subr.mxu0 0.0
        %923 = vmatpush1.xpose.msra.mxu0 0.0
        %924 = vmatprep.subr.mxu0 0.0
        %925 = vmatpush1.xpose.msra.mxu0 0.0
        %926 = vmatprep.subr.mxu0 0.0
        %927 = vmatpush1.xpose.msra.mxu0 0.0
        %928 = vmatprep.subr.mxu0 0.0
        %929 = vmatpush1.xpose.msra.mxu0 0.0
        %930 = vmatprep.subr.mxu0 0.0
        %931 = vmatpush1.xpose.msra.mxu0 0.0
        %932 = vmatprep.subr.mxu0 0.0
        %933 = vmatpush1.xpose.msra.mxu0 0.0
        %934 = vmatprep.subr.mxu0 0.0
        %935 = vmatpush1.xpose.msra.mxu0 0.0
        %936 = vmatprep.subr.mxu0 0.0
        %937 = vmatpush1.xpose.msra.mxu0 0.0
        %938 = vmatprep.subr.mxu0 0.0
        %939 = vmatpush1.xpose.msra.mxu0 0.0
        %940 = vmatprep.subr.mxu0 0.0
        %941 = vmatpush1.xpose.msra.mxu0 0.0
        %942 = vmatprep.mubr.f32.mxu0 0.0
        %943 = vmatmul.mubr.f32.gmra.mrb[0].mxu0 %v874
        %v944 = vpop.f32.mrb[0].mxu0
        %v945 = vadd.f32 0.0, %v944
        %v946 = vpop.f32.mrb[0].mxu0
        %947 = vdwg.mxu0
        %v948 = vsel %vm368, %v945, -inf
        %949 = vmax.xlane.f32.xlu0 %v948
        %v950 = vpop.xlane.xlu0 %949
        %v951 = vsub.f32 %v945, %v950
        %v952 = vmul.f32 %v951, 1.442695
        %v953 = vpow.pop %v952
        %v954 = vsel %vm368, %v953, 0.0
        %955 = vadd.xlane.f32.xlu0 %v954
        %v956 = vpop.xlane.xlu0 %955
        %v957 = vrcp.pop %v956
        %v958 = vmul.f32 %v953, %v957
        %v961 = vsel %vm368, %v958, 0
        %963 = vmatprep.subr.mxu0 0.0
        %964 = vmatpush1.msra.mxu0 %v873
        %965 = vmatprep.subr.mxu0 0.0
        %966 = vmatpush1.msra.mxu0 0.0
        %967 = vmatprep.subr.mxu0 0.0
        %968 = vmatpush1.msra.mxu0 0.0
        %969 = vmatprep.subr.mxu0 0.0
        %970 = vmatpush1.msra.mxu0 0.0
        %971 = vmatprep.subr.mxu0 0.0
        %972 = vmatpush1.msra.mxu0 0.0
        %973 = vmatprep.subr.mxu0 0.0
        %974 = vmatpush1.msra.mxu0 0.0
        %975 = vmatprep.subr.mxu0 0.0
        %976 = vmatpush1.msra.mxu0 0.0
        %977 = vmatprep.subr.mxu0 0.0
        %978 = vmatpush1.msra.mxu0 0.0
        %979 = vmatprep.subr.mxu0 0.0
        %980 = vmatpush1.msra.mxu0 0.0
        %981 = vmatprep.subr.mxu0 0.0
        %982 = vmatpush1.msra.mxu0 0.0
        %983 = vmatprep.subr.mxu0 0.0
        %984 = vmatpush1.msra.mxu0 0.0
        %985 = vmatprep.subr.mxu0 0.0
        %986 = vmatpush1.msra.mxu0 0.0
        %987 = vmatprep.subr.mxu0 0.0
        %988 = vmatpush1.msra.mxu0 0.0
        %989 = vmatprep.subr.mxu0 0.0
        %990 = vmatpush1.msra.mxu0 0.0
        %991 = vmatprep.subr.mxu0 0.0
        %992 = vmatpush1.msra.mxu0 0.0
        %993 = vmatprep.subr.mxu0 0.0
        %994 = vmatpush1.msra.mxu0 0.0
        %995 = vmatprep.subr.mxu0 0.0
        %996 = vmatpush1.msra.mxu0 0.0
        %997 = vmatprep.subr.mxu0 0.0
        %998 = vmatpush1.msra.mxu0 0.0
        %999 = vmatprep.subr.mxu0 0.0
        %1000 = vmatpush1.msra.mxu0 0.0
        %1001 = vmatprep.subr.mxu0 0.0
        %1002 = vmatpush1.msra.mxu0 0.0
        %1003 = vmatprep.subr.mxu0 0.0
        %1004 = vmatpush1.msra.mxu0 0.0
        %1005 = vmatprep.subr.mxu0 0.0
        %1006 = vmatpush1.msra.mxu0 0.0
        %1007 = vmatprep.subr.mxu0 0.0
        %1008 = vmatpush1.msra.mxu0 0.0
        %1009 = vmatprep.subr.mxu0 0.0
        %1010 = vmatpush1.msra.mxu0 0.0
        %1011 = vmatprep.subr.mxu0 0.0
        %1012 = vmatpush1.msra.mxu0 0.0
        %1013 = vmatprep.subr.mxu0 0.0
        %1014 = vmatpush1.msra.mxu0 0.0
        %1015 = vmatprep.subr.mxu0 0.0
        %1016 = vmatpush1.msra.mxu0 0.0
        %1017 = vmatprep.subr.mxu0 0.0
        %1018 = vmatpush1.msra.mxu0 0.0
        %1019 = vmatprep.subr.mxu0 0.0
        %1020 = vmatpush1.msra.mxu0 0.0
        %1021 = vmatprep.subr.mxu0 0.0
        %1022 = vmatpush1.msra.mxu0 0.0
        %1023 = vmatprep.subr.mxu0 0.0
        %1024 = vmatpush1.msra.mxu0 0.0
        %1025 = vmatprep.subr.mxu0 0.0
        %1026 = vmatpush1.msra.mxu0 0.0
        %1027 = vmatprep.mubr.f32.mxu0 0.0
        %1028 = vmatmul.mubr.f32.gmra.mrb[0].mxu0 %v961
        %v1029 = vpop.f32.mrb[0].mxu0
        %v1030 = vadd.f32 0.0, %v1029
        %v1031 = vpop.f32.mrb[0].mxu0
        %1032 = vdwg.mxu0
        %1033 = vrot.lane.b32.xlu0 %v529, 112
        %v1034 = vpop.permute.xlu0 %1033
        %1035 = vrot.lane.b32.xlu0 %v530, 112
        %v1036 = vpop.permute.xlu0 %1035
        %1037 = vrot.lane.b32.xlu0 %v531, 112
        %v1038 = vpop.permute.xlu0 %1037
        %1039 = vrot.lane.b32.xlu0 %v532, 112
        %v1040 = vpop.permute.xlu0 %1039
        %v1042 = vsel %vm368, %v1030, 0
        %v1044 = vsel %vm368, %v1034, 0
        %v1046 = vsel %vm368, %v1036, 0
        %v1048 = vsel %vm368, %v1038, 0
        %v1050 = vsel %vm368, %v1040, 0
        %1052 = vmatprep.subr.mxu0 0.0
        %1053 = vmatpush1.xpose.msra.mxu0 %v1044
        %1054 = vmatprep.subr.mxu0 0.0
        %1055 = vmatpush1.xpose.msra.mxu0 %v1046
        %1056 = vmatprep.subr.mxu0 0.0
        %1057 = vmatpush1.xpose.msra.mxu0 %v1048
        %1058 = vmatprep.subr.mxu0 0.0
        %1059 = vmatpush1.xpose.msra.mxu0 %v1050
        %1060 = vmatprep.subr.mxu0 0.0
        %1061 = vmatpush1.xpose.msra.mxu0 0.0
        %1062 = vmatprep.subr.mxu0 0.0
        %1063 = vmatpush1.xpose.msra.mxu0 0.0
        %1064 = vmatprep.subr.mxu0 0.0
        %1065 = vmatpush1.xpose.msra.mxu0 0.0
        %1066 = vmatprep.subr.mxu0 0.0
        %1067 = vmatpush1.xpose.msra.mxu0 0.0
        %1068 = vmatprep.subr.mxu0 0.0
        %1069 = vmatpush1.xpose.msra.mxu0 0.0
        %1070 = vmatprep.subr.mxu0 0.0
        %1071 = vmatpush1.xpose.msra.mxu0 0.0
        %1072 = vmatprep.subr.mxu0 0.0
        %1073 = vmatpush1.xpose.msra.mxu0 0.0
        %1074 = vmatprep.subr.mxu0 0.0
        %1075 = vmatpush1.xpose.msra.mxu0 0.0
        %1076 = vmatprep.subr.mxu0 0.0
        %1077 = vmatpush1.xpose.msra.mxu0 0.0
        %1078 = vmatprep.subr.mxu0 0.0
        %1079 = vmatpush1.xpose.msra.mxu0 0.0
        %1080 = vmatprep.subr.mxu0 0.0
        %1081 = vmatpush1.xpose.msra.mxu0 0.0
        %1082 = vmatprep.subr.mxu0 0.0
        %1083 = vmatpush1.xpose.msra.mxu0 0.0
        %1084 = vmatprep.subr.mxu0 0.0
        %1085 = vmatpush1.xpose.msra.mxu0 0.0
        %1086 = vmatprep.subr.mxu0 0.0
        %1087 = vmatpush1.xpose.msra.mxu0 0.0
        %1088 = vmatprep.subr.mxu0 0.0
        %1089 = vmatpush1.xpose.msra.mxu0 0.0
        %1090 = vmatprep.subr.mxu0 0.0
        %1091 = vmatpush1.xpose.msra.mxu0 0.0
        %1092 = vmatprep.subr.mxu0 0.0
        %1093 = vmatpush1.xpose.msra.mxu0 0.0
        %1094 = vmatprep.subr.mxu0 0.0
        %1095 = vmatpush1.xpose.msra.mxu0 0.0
        %1096 = vmatprep.subr.mxu0 0.0
        %1097 = vmatpush1.xpose.msra.mxu0 0.0
        %1098 = vmatprep.subr.mxu0 0.0
        %1099 = vmatpush1.xpose.msra.mxu0 0.0
        %1100 = vmatprep.subr.mxu0 0.0
        %1101 = vmatpush1.xpose.msra.mxu0 0.0
        %1102 = vmatprep.subr.mxu0 0.0
        %1103 = vmatpush1.xpose.msra.mxu0 0.0
        %1104 = vmatprep.subr.mxu0 0.0
        %1105 = vmatpush1.xpose.msra.mxu0 0.0
        %1106 = vmatprep.subr.mxu0 0.0
        %1107 = vmatpush1.xpose.msra.mxu0 0.0
        %1108 = vmatprep.subr.mxu0 0.0
        %1109 = vmatpush1.xpose.msra.mxu0 0.0
        %1110 = vmatprep.subr.mxu0 0.0
        %1111 = vmatpush1.xpose.msra.mxu0 0.0
        %1112 = vmatprep.subr.mxu0 0.0
        %1113 = vmatpush1.xpose.msra.mxu0 0.0
        %1114 = vmatprep.subr.mxu0 0.0
        %1115 = vmatpush1.xpose.msra.mxu0 0.0
        %1116 = vmatprep.mubr.f32.mxu0 0.0
        %1117 = vmatmul.mubr.f32.gmra.mrb[0].mxu0 %v1042
        %v1118 = vpop.f32.mrb[0].mxu0
        %v1119 = vadd.f32 0.0, %v1118
        %v1120 = vpop.f32.mrb[0].mxu0
        %1121 = vdwg.mxu0
        %v1122 = vadd.f32 %v867, %v1119
        %1123 = vrot.lane.b32.xlu0 %v367, 104
        %v1124 = vpop.permute.xlu0 %1123
        %1125 = vrot.lane.b32.xlu0 %v364, 104
        %v1126 = vpop.permute.xlu0 %1125
        %v1127 = vsel %vm368, %v1124, 0
        %v1129 = vsel %vm368, %v1126, 0
        %1131 = vmatprep.subr.mxu0 0.0
        %1132 = vmatpush1.xpose.msra.mxu0 %v1129
        %1133 = vmatprep.subr.mxu0 0.0
        %1134 = vmatpush1.xpose.msra.mxu0 0.0
        %1135 = vmatprep.subr.mxu0 0.0
        %1136 = vmatpush1.xpose.msra.mxu0 0.0
        %1137 = vmatprep.subr.mxu0 0.0
        %1138 = vmatpush1.xpose.msra.mxu0 0.0
        %1139 = vmatprep.subr.mxu0 0.0
        %1140 = vmatpush1.xpose.msra.mxu0 0.0
        %1141 = vmatprep.subr.mxu0 0.0
        %1142 = vmatpush1.xpose.msra.mxu0 0.0
        %1143 = vmatprep.subr.mxu0 0.0
        %1144 = vmatpush1.xpose.msra.mxu0 0.0
        %1145 = vmatprep.subr.mxu0 0.0
        %1146 = vmatpush1.xpose.msra.mxu0 0.0
        %1147 = vmatprep.subr.mxu0 0.0
        %1148 = vmatpush1.xpose.msra.mxu0 0.0
        %1149 = vmatprep.subr.mxu0 0.0
        %1150 = vmatpush1.xpose.msra.mxu0 0.0
        %1151 = vmatprep.subr.mxu0 0.0
        %1152 = vmatpush1.xpose.msra.mxu0 0.0
        %1153 = vmatprep.subr.mxu0 0.0
        %1154 = vmatpush1.xpose.msra.mxu0 0.0
        %1155 = vmatprep.subr.mxu0 0.0
        %1156 = vmatpush1.xpose.msra.mxu0 0.0
        %1157 = vmatprep.subr.mxu0 0.0
        %1158 = vmatpush1.xpose.msra.mxu0 0.0
        %1159 = vmatprep.subr.mxu0 0.0
        %1160 = vmatpush1.xpose.msra.mxu0 0.0
        %1161 = vmatprep.subr.mxu0 0.0
        %1162 = vmatpush1.xpose.msra.mxu0 0.0
        %1163 = vmatprep.subr.mxu0 0.0
        %1164 = vmatpush1.xpose.msra.mxu0 0.0
        %1165 = vmatprep.subr.mxu0 0.0
        %1166 = vmatpush1.xpose.msra.mxu0 0.0
        %1167 = vmatprep.subr.mxu0 0.0
        %1168 = vmatpush1.xpose.msra.mxu0 0.0
        %1169 = vmatprep.subr.mxu0 0.0
        %1170 = vmatpush1.xpose.msra.mxu0 0.0
        %1171 = vmatprep.subr.mxu0 0.0
        %1172 = vmatpush1.xpose.msra.mxu0 0.0
        %1173 = vmatprep.subr.mxu0 0.0
        %1174 = vmatpush1.xpose.msra.mxu0 0.0
        %1175 = vmatprep.subr.mxu0 0.0
        %1176 = vmatpush1.xpose.msra.mxu0 0.0
        %1177 = vmatprep.subr.mxu0 0.0
        %1178 = vmatpush1.xpose.msra.mxu0 0.0
        %1179 = vmatprep.subr.mxu0 0.0
        %1180 = vmatpush1.xpose.msra.mxu0 0.0
        %1181 = vmatprep.subr.mxu0 0.0
        %1182 = vmatpush1.xpose.msra.mxu0 0.0
        %1183 = vmatprep.subr.mxu0 0.0
        %1184 = vmatpush1.xpose.msra.mxu0 0.0
        %1185 = vmatprep.subr.mxu0 0.0
        %1186 = vmatpush1.xpose.msra.mxu0 0.0
        %1187 = vmatprep.subr.mxu0 0.0
        %1188 = vmatpush1.xpose.msra.mxu0 0.0
        %1189 = vmatprep.subr.mxu0 0.0
        %1190 = vmatpush1.xpose.msra.mxu0 0.0
        %1191 = vmatprep.subr.mxu0 0.0
        %1192 = vmatpush1.xpose.msra.mxu0 0.0
        %1193 = vmatprep.subr.mxu0 0.0
        %1194 = vmatpush1.xpose.msra.mxu0 0.0
        %1195 = vmatprep.mubr.f32.mxu0 0.0
        %1196 = vmatmul.mubr.f32.gmra.mrb[0].mxu0 %v1127
        %v1197 = vpop.f32.mrb[0].mxu0
        %v1198 = vadd.f32 0.0, %v1197
        %v1199 = vpop.f32.mrb[0].mxu0
        %1200 = vdwg.mxu0
        %v1201 = vsel %vm368, %v1198, -inf
        %1202 = vmax.xlane.f32.xlu0 %v1201
        %v1203 = vpop.xlane.xlu0 %1202
        %v1204 = vsub.f32 %v1198, %v1203
        %v1205 = vmul.f32 %v1204, 1.442695
        %v1206 = vpow.pop %v1205
        %v1207 = vsel %vm368, %v1206, 0.0
        %1208 = vadd.xlane.f32.xlu0 %v1207
        %v1209 = vpop.xlane.xlu0 %1208
        %v1210 = vrcp.pop %v1209
        %v1211 = vmul.f32 %v1206, %v1210
        %v1214 = vsel %vm368, %v1211, 0
        %1216 = vmatprep.subr.mxu0 0.0
        %1217 = vmatpush1.msra.mxu0 %v1126
        %1218 = vmatprep.subr.mxu0 0.0
        %1219 = vmatpush1.msra.mxu0 0.0
        %1220 = vmatprep.subr.mxu0 0.0
        %1221 = vmatpush1.msra.mxu0 0.0
        %1222 = vmatprep.subr.mxu0 0.0
        %1223 = vmatpush1.msra.mxu0 0.0
        %1224 = vmatprep.subr.mxu0 0.0
        %1225 = vmatpush1.msra.mxu0 0.0
        %1226 = vmatprep.subr.mxu0 0.0
        %1227 = vmatpush1.msra.mxu0 0.0
        %1228 = vmatprep.subr.mxu0 0.0
        %1229 = vmatpush1.msra.mxu0 0.0
        %1230 = vmatprep.subr.mxu0 0.0
        %1231 = vmatpush1.msra.mxu0 0.0
        %1232 = vmatprep.subr.mxu0 0.0
        %1233 = vmatpush1.msra.mxu0 0.0
        %1234 = vmatprep.subr.mxu0 0.0
        %1235 = vmatpush1.msra.mxu0 0.0
        %1236 = vmatprep.subr.mxu0 0.0
        %1237 = vmatpush1.msra.mxu0 0.0
        %1238 = vmatprep.subr.mxu0 0.0
        %1239 = vmatpush1.msra.mxu0 0.0
        %1240 = vmatprep.subr.mxu0 0.0
        %1241 = vmatpush1.msra.mxu0 0.0
        %1242 = vmatprep.subr.mxu0 0.0
        %1243 = vmatpush1.msra.mxu0 0.0
        %1244 = vmatprep.subr.mxu0 0.0
        %1245 = vmatpush1.msra.mxu0 0.0
        %1246 = vmatprep.subr.mxu0 0.0
        %1247 = vmatpush1.msra.mxu0 0.0
        %1248 = vmatprep.subr.mxu0 0.0
        %1249 = vmatpush1.msra.mxu0 0.0
        %1250 = vmatprep.subr.mxu0 0.0
        %1251 = vmatpush1.msra.mxu0 0.0
        %1252 = vmatprep.subr.mxu0 0.0
        %1253 = vmatpush1.msra.mxu0 0.0
        %1254 = vmatprep.subr.mxu0 0.0
        %1255 = vmatpush1.msra.mxu0 0.0
        %1256 = vmatprep.subr.mxu0 0.0
        %1257 = vmatpush1.msra.mxu0 0.0
        %1258 = vmatprep.subr.mxu0 0.0
        %1259 = vmatpush1.msra.mxu0 0.0
        %1260 = vmatprep.subr.mxu0 0.0
        %1261 = vmatpush1.msra.mxu0 0.0
        %1262 = vmatprep.subr.mxu0 0.0
        %1263 = vmatpush1.msra.mxu0 0.0
        %1264 = vmatprep.subr.mxu0 0.0
        %1265 = vmatpush1.msra.mxu0 0.0
        %1266 = vmatprep.subr.mxu0 0.0
        %1267 = vmatpush1.msra.mxu0 0.0
        %1268 = vmatprep.subr.mxu0 0.0
        %1269 = vmatpush1.msra.mxu0 0.0
        %1270 = vmatprep.subr.mxu0 0.0
        %1271 = vmatpush1.msra.mxu0 0.0
        %1272 = vmatprep.subr.mxu0 0.0
        %1273 = vmatpush1.msra.mxu0 0.0
        %1274 = vmatprep.subr.mxu0 0.0
        %1275 = vmatpush1.msra.mxu0 0.0
        %1276 = vmatprep.subr.mxu0 0.0
        %1277 = vmatpush1.msra.mxu0 0.0
        %1278 = vmatprep.subr.mxu0 0.0
        %1279 = vmatpush1.msra.mxu0 0.0
        %1280 = vmatprep.mubr.f32.mxu0 0.0
        %1281 = vmatmul.mubr.f32.gmra.mrb[0].mxu0 %v1214
        %v1282 = vpop.f32.mrb[0].mxu0
        %v1283 = vadd.f32 0.0, %v1282
        %v1284 = vpop.f32.mrb[0].mxu0
        %1285 = vdwg.mxu0
        %1286 = vrot.lane.b32.xlu0 %v529, 104
        %v1287 = vpop.permute.xlu0 %1286
        %1288 = vrot.lane.b32.xlu0 %v530, 104
        %v1289 = vpop.permute.xlu0 %1288
        %1290 = vrot.lane.b32.xlu0 %v531, 104
        %v1291 = vpop.permute.xlu0 %1290
        %1292 = vrot.lane.b32.xlu0 %v532, 104
        %v1293 = vpop.permute.xlu0 %1292
        %v1295 = vsel %vm368, %v1283, 0
        %v1297 = vsel %vm368, %v1287, 0
        %v1299 = vsel %vm368, %v1289, 0
        %v1301 = vsel %vm368, %v1291, 0
        %v1303 = vsel %vm368, %v1293, 0
        %1305 = vmatprep.subr.mxu0 0.0
        %1306 = vmatpush1.xpose.msra.mxu0 %v1297
        %1307 = vmatprep.subr.mxu0 0.0
        %1308 = vmatpush1.xpose.msra.mxu0 %v1299
        %1309 = vmatprep.subr.mxu0 0.0
        %1310 = vmatpush1.xpose.msra.mxu0 %v1301
        %1311 = vmatprep.subr.mxu0 0.0
        %1312 = vmatpush1.xpose.msra.mxu0 %v1303
        %1313 = vmatprep.subr.mxu0 0.0
        %1314 = vmatpush1.xpose.msra.mxu0 0.0
        %1315 = vmatprep.subr.mxu0 0.0
        %1316 = vmatpush1.xpose.msra.mxu0 0.0
        %1317 = vmatprep.subr.mxu0 0.0
        %1318 = vmatpush1.xpose.msra.mxu0 0.0
        %1319 = vmatprep.subr.mxu0 0.0
        %1320 = vmatpush1.xpose.msra.mxu0 0.0
        %1321 = vmatprep.subr.mxu0 0.0
        %1322 = vmatpush1.xpose.msra.mxu0 0.0
        %1323 = vmatprep.subr.mxu0 0.0
        %1324 = vmatpush1.xpose.msra.mxu0 0.0
        %1325 = vmatprep.subr.mxu0 0.0
        %1326 = vmatpush1.xpose.msra.mxu0 0.0
        %1327 = vmatprep.subr.mxu0 0.0
        %1328 = vmatpush1.xpose.msra.mxu0 0.0
        %1329 = vmatprep.subr.mxu0 0.0
        %1330 = vmatpush1.xpose.msra.mxu0 0.0
        %1331 = vmatprep.subr.mxu0 0.0
        %1332 = vmatpush1.xpose.msra.mxu0 0.0
        %1333 = vmatprep.subr.mxu0 0.0
        %1334 = vmatpush1.xpose.msra.mxu0 0.0
        %1335 = vmatprep.subr.mxu0 0.0
        %1336 = vmatpush1.xpose.msra.mxu0 0.0
        %1337 = vmatprep.subr.mxu0 0.0
        %1338 = vmatpush1.xpose.msra.mxu0 0.0
        %1339 = vmatprep.subr.mxu0 0.0
        %1340 = vmatpush1.xpose.msra.mxu0 0.0
        %1341 = vmatprep.subr.mxu0 0.0
        %1342 = vmatpush1.xpose.msra.mxu0 0.0
        %1343 = vmatprep.subr.mxu0 0.0
        %1344 = vmatpush1.xpose.msra.mxu0 0.0
        %1345 = vmatprep.subr.mxu0 0.0
        %1346 = vmatpush1.xpose.msra.mxu0 0.0
        %1347 = vmatprep.subr.mxu0 0.0
        %1348 = vmatpush1.xpose.msra.mxu0 0.0
        %1349 = vmatprep.subr.mxu0 0.0
        %1350 = vmatpush1.xpose.msra.mxu0 0.0
        %1351 = vmatprep.subr.mxu0 0.0
        %1352 = vmatpush1.xpose.msra.mxu0 0.0
        %1353 = vmatprep.subr.mxu0 0.0
        %1354 = vmatpush1.xpose.msra.mxu0 0.0
        %1355 = vmatprep.subr.mxu0 0.0
        %1356 = vmatpush1.xpose.msra.mxu0 0.0
        %1357 = vmatprep.subr.mxu0 0.0
        %1358 = vmatpush1.xpose.msra.mxu0 0.0
        %1359 = vmatprep.subr.mxu0 0.0
        %1360 = vmatpush1.xpose.msra.mxu0 0.0
        %1361 = vmatprep.subr.mxu0 0.0
        %1362 = vmatpush1.xpose.msra.mxu0 0.0
        %1363 = vmatprep.subr.mxu0 0.0
        %1364 = vmatpush1.xpose.msra.mxu0 0.0
        %1365 = vmatprep.subr.mxu0 0.0
        %1366 = vmatpush1.xpose.msra.mxu0 0.0
        %1367 = vmatprep.subr.mxu0 0.0
        %1368 = vmatpush1.xpose.msra.mxu0 0.0
        %1369 = vmatprep.mubr.f32.mxu0 0.0
        %1370 = vmatmul.mubr.f32.gmra.mrb[0].mxu0 %v1295
        %v1371 = vpop.f32.mrb[0].mxu0
        %v1372 = vadd.f32 0.0, %v1371
        %v1373 = vpop.f32.mrb[0].mxu0
        %1374 = vdwg.mxu0
        %v1375 = vadd.f32 %v1122, %v1372
        %v1376 = vld [vmem:[%s4] sm:$0x1]
        %v1378 = vlaneseq
        %v1379 = vshrl.u32 %v1378, 7
        %v1380 = vsub.s32 0, %v1379
        %v1381 = vrot.slane %v1376, %v1380
        %v1383 = vadd.f32 %v1375, %v1381
        %1384 = vst.msk [vmem:[%s268] sm:$0xff] %vm281, %v1383
        %s1385 = sand.u32 %s141, 1
        %s1386 = scalar_lea.sflag [#allocation4], %s1385
        %s1387 = sand.u32 %s141, 1
        %s1388 = smul.addr %s1387, 8
        %s1389 = scalar_lea.vmem [#allocation8], %s1388
        // Predicated region
        $region53: #{tpu_custom_call.1} parent=39 // pred_check
          %p1390 = pneg %p151
        $region54: #{tpu_custom_call.1} parent=39 // pred_check_branch
          %1392 = sbr.rel (%p1390) target = $region56
        $region55: #{tpu_custom_call.1} parent=39 // pred_region
          %s1394 = ssub.s32 128, 128
          %1395 = vsyncadd %s1386, %s1394
          %s1396 = smul.addr %s23, 128
          %s1397 = scalar_lea.hbm %s5, %s1396
          %s1399 = sshll.u32 %s1389, 4
          %s1400 = int_to_ptr.vmem [resolvable:$true] %s1399
          %1402 = dma.vmem_to_hbm [thread:$0]  %s1400, 128, %s1397, %s1386
        $region56: #{tpu_custom_call.1} parent=39 // pred_fallthru
          _
      $region40: #{tpu_custom_call.1} parent=5 // pred_fallthru
        _
      %p1403 = scmp.le.s32.totalorder 2, %s18
      // Predicated region
      $region57: #{tpu_custom_call.1} parent=5 // pred_check
        %p1404 = pneg %p1403
      $region58: #{tpu_custom_call.1} parent=5 // pred_check_branch
        %1406 = sbr.rel (%p1404) target = $region60
      $region59: #{tpu_custom_call.1} parent=5 // pred_region
        %s1407 = ssub.s32 %s18, 2
        // Predicated region
        $region61: #{tpu_custom_call.1} parent=59 // pred_check
          %p1408 = pneg %p157
        $region62: #{tpu_custom_call.1} parent=59 // pred_check_branch
          %1410 = sbr.rel (%p1408) target = $region64
        $region63: #{tpu_custom_call.1} parent=59 // pred_region
          %s1411 = sand.u32 %s142, 1
          %s1412 = scalar_lea.sflag [#allocation4], %s1411
          %s1413 = sand.u32 %s142, 1
          %s1414 = smul.addr %s1413, 8
          %s1415 = scalar_lea.vmem [#allocation8], %s1414
          %1416 = dma.done %s1412, 128
        $region64: #{tpu_custom_call.1} parent=59 // pred_fallthru
          _
      $region60: #{tpu_custom_call.1} parent=5 // pred_fallthru
        _
    $region6: #{tpu_custom_call.1} parent=1 // loop_footer
      %s22 = sadd.s32 1, %s18
    $region7: #{tpu_custom_call.1} parent=1 // loop_footer_branch
      %17 = sbr.rel target = $region3
    $region8: #{tpu_custom_call.1} parent=1 // loop_exit
      _
    %1417 = vsyncpa [#allocation3], 1
    %s1418 = scalar_lea.sflag [#allocation3], 1
    %1419 = vsyncpa %s1418, 1
    %1420 = vsyncpa [#allocation6], 1
    %1421 = vsyncpa [#allocation4], 1
    %s1422 = scalar_lea.sflag [#allocation4], 1
    %1423 = vsyncpa %s1422, 1

</llo_original>
